<compile_context>
chip_gen: v7x
topology: tpu7x:2x2x1
jax: 0.10.0
libtpu: 0.0.40
codegen_flags: <defaults>
</compile_context>

<pallas_src>
import functools

import jax
import jax.numpy as jnp
from jax.experimental import pallas as pl
from jax.experimental.pallas import tpu as pltpu


# ----------------------------- fused kernel ---------------------------------


def _lstm_model_kernel(*refs, seq_len, hidden_size, num_layers, batch_pad):
    """Fused multi-layer LSTM + FC forward, single invocation (no grid).

    refs layout:
      x_ref      : (T*Bp, I)   time-major, batch padded to 8, pre-flattened
      wih0_ref   : (I, 4H)     layer-0 input->gates (pre-transposed)
      whh0_ref   : (H, 4H)     layer-0 hidden->gates (pre-transposed)
      b0_ref     : (1, 4H)     layer-0 combined bias (b_ih + b_hh)
      for each upper layer l in 1..num_layers-1:
        wcat_ref : (2H, 4H)    [W_ih_l ; W_hh_l] pre-concatenated
        bl_ref   : (1, 4H)     combined bias
      wfc_ref    : (1, H)      FC weight as a row (VPU mul + lane reduce)
      bfc_ref    : (1, 1)
      o_ref      : (Bp, 1)     output
    """
    T, H, Bp = seq_len, hidden_size, batch_pad

    x_ref = refs[0]
    wih0_ref, whh0_ref, b0_ref = refs[1:4]
    upper_refs = refs[4:4 + 2 * (num_layers - 1)]
    wfc_ref, bfc_ref, o_ref = refs[4 + 2 * (num_layers - 1):]

    def cell(gates, c_prev):
        # Full-vreg transcendentals (one sigmoid + one tanh over (Bp, 4H)),
        # then quarter-lane slices for the cheap VPU combine.
        s = jax.nn.sigmoid(gates)
        th = jnp.tanh(gates)
        i_g = s[:, 0 * H:1 * H]      # input gate
        f_g = s[:, 1 * H:2 * H]      # forget gate
        g_g = th[:, 2 * H:3 * H]     # cell candidate
        o_g = s[:, 3 * H:4 * H]      # output gate
        c_new = f_g * c_prev + i_g * g_g
        h_new = o_g * jnp.tanh(c_new)
        return h_new, c_new

    # Hoisted, time-parallel layer-0 input projection: one big MXU matmul,
    # off the serial critical path.  (T*Bp, 4H)
    xg0 = (
        jnp.dot(x_ref[...], wih0_ref[...], preferred_element_type=jnp.float32)
        + b0_ref[...]
    )
    whh0 = whh0_ref[...]
    wcats = [upper_refs[2 * i][...] for i in range(num_layers - 1)]
    bups = [upper_refs[2 * i + 1][...] for i in range(num_layers - 1)]

    h = [jnp.zeros((Bp, H), jnp.float32) for _ in range(num_layers)]
    c = [jnp.zeros((Bp, H), jnp.float32) for _ in range(num_layers)]

    # T is tiny and static: fully unrolled, wavefront-interleaved recurrence.
    for t in range(T):
        # layer 0, step t
        g0 = xg0[t * Bp:(t + 1) * Bp, :] + jnp.dot(
            h[0], whh0, preferred_element_type=jnp.float32)
        h[0], c[0] = cell(g0, c[0])
        # upper layers consume h_{l-1, t} immediately (stays in vregs),
        # with the two per-step matmuls fused into one K=2H contraction.
        for l in range(1, num_layers):
            hin = jnp.concatenate([h[l - 1], h[l]], axis=-1)   # (Bp, 2H)
            gl = jnp.dot(hin, wcats[l - 1],
                         preferred_element_type=jnp.float32) + bups[l - 1]
            h[l], c[l] = cell(gl, c[l])

    # Final FC on the last timestep of the top layer: VPU multiply +
    # cross-lane reduce instead of an N=1 MXU matmul at the kernel tail.
    out = jnp.sum(h[-1] * wfc_ref[...], axis=-1, keepdims=True) + bfc_ref[...]
    o_ref[...] = out.astype(o_ref.dtype)


# ----------------------------- wrapper ---------------------------------------


def lstm_model_forward(x_bti, params):
    """Full LSTMModel.forward.

    x_bti: (B, T, input_size) float32 (batch_first, matching PyTorch).
    returns (B, 1) float32.
    """
    B, T, I = x_bti.shape
    H = params["hidden_size"]
    num_layers = params["num_layers"]
    kp = params["kernel"]

    # batch-first -> time-major, pad batch to a full sublane group (8),
    # pre-flatten to (T*Bp, I) so the kernel never reshapes.
    Bp = max(8, ((B + 7) // 8) * 8)
    x = jnp.transpose(x_bti, (1, 0, 2))                 # (T, B, I)
    if Bp != B:
        x = jnp.pad(x, ((0, 0), (0, Bp - B), (0, 0)))   # (T, Bp, I)
    x_flat = x.reshape(T * Bp, I)

    kernel = functools.partial(
        _lstm_model_kernel,
        seq_len=T, hidden_size=H, num_layers=num_layers, batch_pad=Bp,
    )

    args = [x_flat, kp["w_ih0_t"], kp["w_hh0_t"], kp["b0"]]
    for layer in kp["upper"]:
        args += [layer["w_cat"], layer["bias"]]
    args += [kp["fc_w_row"], kp["fc_b"]]

    vmem_spec = pl.BlockSpec(memory_space=pltpu.MemorySpace.VMEM)

    out = pl.pallas_call(
        kernel,
        out_shape=jax.ShapeDtypeStruct((Bp, 1), jnp.float32),
        in_specs=[vmem_spec] * len(args),
        out_specs=vmem_spec,
        # No grid: all operands (<100 KB total) are VMEM-resident in a single
        # invocation; only the (Bp, 1) result goes back to HBM.
        # TODO(synk): if batch scales (B >= 256), add a batch-tile grid with
        # dimension_semantics=("parallel",) so both v7x TensorCores are used.
    )(*args)

    return out[:B]


# --------------------------- parameter init ----------------------------------


def init_params(key, input_size, hidden_size, num_layers):
    """PyTorch-style uniform(-1/sqrt(H), 1/sqrt(H)) init, deterministic.

    Returns both raw PyTorch-layout weights (for the pure-JAX reference) and
    the kernel-ready layout (transposed / bias-combined / layer>=1 fused).
    """
    H = hidden_size
    bound = 1.0 / (H ** 0.5)
    raw = []
    for l in range(num_layers):
        in_sz = input_size if l == 0 else H
        key, k1, k2, k3, k4 = jax.random.split(key, 5)
        w_ih = jax.random.uniform(k1, (4 * H, in_sz), jnp.float32, -bound, bound)
        w_hh = jax.random.uniform(k2, (4 * H, H), jnp.float32, -bound, bound)
        b_ih = jax.random.uniform(k3, (4 * H,), jnp.float32, -bound, bound)
        b_hh = jax.random.uniform(k4, (4 * H,), jnp.float32, -bound, bound)
        raw.append({"w_ih": w_ih, "w_hh": w_hh, "b_ih": b_ih, "b_hh": b_hh})
    key, k5, k6 = jax.random.split(key, 3)
    fc_w = jax.random.uniform(k5, (1, H), jnp.float32, -bound, bound)
    fc_b = jax.random.uniform(k6, (1,), jnp.float32, -bound, bound)

    l0 = raw[0]
    kernel_layout = {
        "w_ih0_t": l0["w_ih"].T,                        # (I, 4H)
        "w_hh0_t": l0["w_hh"].T,                        # (H, 4H)
        "b0": (l0["b_ih"] + l0["b_hh"])[None, :],       # (1, 4H)
        "upper": [],
        "fc_w_row": fc_w,                               # (1, H)
        "fc_b": fc_b[None, :],                          # (1, 1)
    }
    for l in range(1, num_layers):
        ll = raw[l]
        kernel_layout["upper"].append({
            # [W_ih_l ; W_hh_l] pre-concatenated -> single K=2H matmul/step.
            "w_cat": jnp.concatenate([ll["w_ih"].T, ll["w_hh"].T], axis=0),
            "bias": (ll["b_ih"] + ll["b_hh"])[None, :],
        })

    return {
        "raw": raw,
        "kernel": kernel_layout,
        "hidden_size": H,
        "num_layers": num_layers,
    }


# ------------------------------ reference ------------------------------------


def reference_forward(x_bti, params):
    """Pure-JAX reference with PyTorch's exact per-layer/per-step grouping."""
    x = jnp.transpose(x_bti, (1, 0, 2))  # (T, B, I)
    T, B, _ = x.shape
    H = params["hidden_size"]
    for layer in params["raw"]:
        h = jnp.zeros((B, H), jnp.float32)
        c = jnp.zeros((B, H), jnp.float32)
        outs = []
        for t in range(T):
            g = (x[t] @ layer["w_ih"].T + h @ layer["w_hh"].T
                 + layer["b_ih"] + layer["b_hh"])
            i_g = jax.nn.sigmoid(g[:, 0 * H:1 * H])
            f_g = jax.nn.sigmoid(g[:, 1 * H:2 * H])
            g_g = jnp.tanh(g[:, 2 * H:3 * H])
            o_g = jax.nn.sigmoid(g[:, 3 * H:4 * H])
            c = f_g * c + i_g * g_g
            h = o_g * jnp.tanh(c)
            outs.append(h)
        x = jnp.stack(outs, axis=0)
    fc_w = params["kernel"]["fc_w_row"]   # (1, H)
    fc_b = params["kernel"]["fc_b"]       # (1, 1)
    return x[-1] @ fc_w.T + fc_b


# -------------------------------- main ---------------------------------------


if __name__ == "__main__":
    INPUT_SIZE = 16
    HIDDEN_SIZE = 32       # 4H = 128: lane-aligned gate axis
    NUM_LAYERS = 2
    BATCH = 4
    SEQ = 8

    key = jax.random.PRNGKey(0)
    key, kx = jax.random.split(key)
    x = jax.random.normal(kx, (BATCH, SEQ, INPUT_SIZE), jnp.float32)

    params = init_params(key, INPUT_SIZE, HIDDEN_SIZE, NUM_LAYERS)

    out = lstm_model_forward(x, params)
    out = jax.block_until_ready(out)
    assert out.shape == (BATCH, 1), out.shape

    ref = jax.block_until_ready(reference_forward(x, params))
    assert jnp.allclose(out, ref, atol=1e-5, rtol=1e-5), (
        f"mismatch: max abs err {jnp.max(jnp.abs(out - ref))}")

    print("KERNEL_OK")
</pallas_src>

<mosaic_0001>
module attributes {stable_mosaic.version = 11 : i64} {
  func.func @_lstm_model_kernel(%arg0: memref<64x16xf32, #tpu.memory_space<vmem>>, %arg1: memref<16x128xf32, #tpu.memory_space<vmem>>, %arg2: memref<32x128xf32, #tpu.memory_space<vmem>>, %arg3: memref<1x128xf32, #tpu.memory_space<vmem>>, %arg4: memref<64x128xf32, #tpu.memory_space<vmem>>, %arg5: memref<1x128xf32, #tpu.memory_space<vmem>>, %arg6: memref<1x32xf32, #tpu.memory_space<vmem>>, %arg7: memref<1x1xf32, #tpu.memory_space<vmem>>, %arg8: memref<8x1xf32, #tpu.memory_space<vmem>>) attributes {dimension_semantics = [], scalar_prefetch = 0 : i64, scratch_operands = 0 : i64, tpu.core_type = #tpu.core_type<tc>} {
    %c0 = arith.constant 0 : index
    %c0_0 = arith.constant 0 : index
    %0 = vector.load %arg0[%c0, %c0_0] : memref<64x16xf32, #tpu.memory_space<vmem>>, vector<64x16xf32>
    %c0_1 = arith.constant 0 : index
    %c0_2 = arith.constant 0 : index
    %1 = vector.load %arg1[%c0_1, %c0_2] : memref<16x128xf32, #tpu.memory_space<vmem>>, vector<16x128xf32>
    %cst = arith.constant dense<0.000000e+00> : vector<64x128xf32>
    %2 = tpu.matmul %0, %1, %cst {dimension_numbers = #tpu.dot_dimension_numbers<[1], [0], [0], [1], [0, 0, 1, 1], [], []>} : vector<64x16xf32>, vector<16x128xf32>, vector<64x128xf32> -> vector<64x128xf32>
    %c0_3 = arith.constant 0 : index
    %c0_4 = arith.constant 0 : index
    %3 = vector.load %arg3[%c0_3, %c0_4] : memref<1x128xf32, #tpu.memory_space<vmem>>, vector<1x128xf32>
    %4 = vector.broadcast %3 : vector<1x128xf32> to vector<64x128xf32>
    %5 = arith.addf %2, %4 : vector<64x128xf32>
    %c0_5 = arith.constant 0 : index
    %c0_6 = arith.constant 0 : index
    %6 = vector.load %arg2[%c0_5, %c0_6] : memref<32x128xf32, #tpu.memory_space<vmem>>, vector<32x128xf32>
    %c0_7 = arith.constant 0 : index
    %c0_8 = arith.constant 0 : index
    %7 = vector.load %arg4[%c0_7, %c0_8] : memref<64x128xf32, #tpu.memory_space<vmem>>, vector<64x128xf32>
    %c0_9 = arith.constant 0 : index
    %c0_10 = arith.constant 0 : index
    %8 = vector.load %arg5[%c0_9, %c0_10] : memref<1x128xf32, #tpu.memory_space<vmem>>, vector<1x128xf32>
    %cst_11 = arith.constant 0.000000e+00 : f32
    %9 = vector.broadcast %cst_11 : f32 to vector<8x32xf32>
    %cst_12 = arith.constant 0.000000e+00 : f32
    %10 = vector.broadcast %cst_12 : f32 to vector<8x32xf32>
    %cst_13 = arith.constant 0.000000e+00 : f32
    %11 = vector.broadcast %cst_13 : f32 to vector<8x32xf32>
    %cst_14 = arith.constant 0.000000e+00 : f32
    %12 = vector.broadcast %cst_14 : f32 to vector<8x32xf32>
    %13 = vector.extract_strided_slice %5 {offsets = [0, 0], sizes = [8, 128], strides = [1, 1]} : vector<64x128xf32> to vector<8x128xf32>
    %cst_15 = arith.constant dense<0.000000e+00> : vector<8x128xf32>
    %14 = tpu.matmul %9, %6, %cst_15 {dimension_numbers = #tpu.dot_dimension_numbers<[1], [0], [0], [1], [0, 0, 1, 1], [], []>} : vector<8x32xf32>, vector<32x128xf32>, vector<8x128xf32> -> vector<8x128xf32>
    %15 = arith.addf %13, %14 : vector<8x128xf32>
    %16 = arith.negf %15 : vector<8x128xf32>
    %17 = math.exp %16 : vector<8x128xf32>
    %cst_16 = arith.constant 1.000000e+00 : f32
    %18 = vector.broadcast %cst_16 : f32 to vector<8x128xf32>
    %19 = arith.addf %18, %17 : vector<8x128xf32>
    %20 = arith.divf %18, %19 : vector<8x128xf32>
    %21 = math.tanh %15 : vector<8x128xf32>
    %22 = vector.extract_strided_slice %20 {offsets = [0, 0], sizes = [8, 32], strides = [1, 1]} : vector<8x128xf32> to vector<8x32xf32>
    %23 = vector.extract_strided_slice %20 {offsets = [0, 32], sizes = [8, 32], strides = [1, 1]} : vector<8x128xf32> to vector<8x32xf32>
    %24 = vector.extract_strided_slice %21 {offsets = [0, 64], sizes = [8, 32], strides = [1, 1]} : vector<8x128xf32> to vector<8x32xf32>
    %25 = vector.extract_strided_slice %20 {offsets = [0, 96], sizes = [8, 32], strides = [1, 1]} : vector<8x128xf32> to vector<8x32xf32>
    %26 = arith.mulf %23, %11 : vector<8x32xf32>
    %27 = arith.mulf %22, %24 : vector<8x32xf32>
    %28 = arith.addf %26, %27 : vector<8x32xf32>
    %29 = math.tanh %28 : vector<8x32xf32>
    %30 = arith.mulf %25, %29 : vector<8x32xf32>
    %31 = tpu.concatenate %30, %10 in 1 : vector<8x32xf32>, vector<8x32xf32> -> vector<8x64xf32>
    %cst_17 = arith.constant dense<0.000000e+00> : vector<8x128xf32>
    %32 = tpu.matmul %31, %7, %cst_17 {dimension_numbers = #tpu.dot_dimension_numbers<[1], [0], [0], [1], [0, 0, 1, 1], [], []>} : vector<8x64xf32>, vector<64x128xf32>, vector<8x128xf32> -> vector<8x128xf32>
    %33 = vector.broadcast %8 : vector<1x128xf32> to vector<8x128xf32>
    %34 = arith.addf %32, %33 : vector<8x128xf32>
    %35 = arith.negf %34 : vector<8x128xf32>
    %36 = math.exp %35 : vector<8x128xf32>
    %cst_18 = arith.constant 1.000000e+00 : f32
    %37 = vector.broadcast %cst_18 : f32 to vector<8x128xf32>
    %38 = arith.addf %37, %36 : vector<8x128xf32>
    %39 = arith.divf %37, %38 : vector<8x128xf32>
    %40 = math.tanh %34 : vector<8x128xf32>
    %41 = vector.extract_strided_slice %39 {offsets = [0, 0], sizes = [8, 32], strides = [1, 1]} : vector<8x128xf32> to vector<8x32xf32>
    %42 = vector.extract_strided_slice %39 {offsets = [0, 32], sizes = [8, 32], strides = [1, 1]} : vector<8x128xf32> to vector<8x32xf32>
    %43 = vector.extract_strided_slice %40 {offsets = [0, 64], sizes = [8, 32], strides = [1, 1]} : vector<8x128xf32> to vector<8x32xf32>
    %44 = vector.extract_strided_slice %39 {offsets = [0, 96], sizes = [8, 32], strides = [1, 1]} : vector<8x128xf32> to vector<8x32xf32>
    %45 = arith.mulf %42, %12 : vector<8x32xf32>
    %46 = arith.mulf %41, %43 : vector<8x32xf32>
    %47 = arith.addf %45, %46 : vector<8x32xf32>
    %48 = math.tanh %47 : vector<8x32xf32>
    %49 = arith.mulf %44, %48 : vector<8x32xf32>
    %50 = vector.extract_strided_slice %5 {offsets = [8, 0], sizes = [8, 128], strides = [1, 1]} : vector<64x128xf32> to vector<8x128xf32>
    %cst_19 = arith.constant dense<0.000000e+00> : vector<8x128xf32>
    %51 = tpu.matmul %30, %6, %cst_19 {dimension_numbers = #tpu.dot_dimension_numbers<[1], [0], [0], [1], [0, 0, 1, 1], [], []>} : vector<8x32xf32>, vector<32x128xf32>, vector<8x128xf32> -> vector<8x128xf32>
    %52 = arith.addf %50, %51 : vector<8x128xf32>
    %53 = arith.negf %52 : vector<8x128xf32>
    %54 = math.exp %53 : vector<8x128xf32>
    %cst_20 = arith.constant 1.000000e+00 : f32
    %55 = vector.broadcast %cst_20 : f32 to vector<8x128xf32>
    %56 = arith.addf %55, %54 : vector<8x128xf32>
    %57 = arith.divf %55, %56 : vector<8x128xf32>
    %58 = math.tanh %52 : vector<8x128xf32>
    %59 = vector.extract_strided_slice %57 {offsets = [0, 0], sizes = [8, 32], strides = [1, 1]} : vector<8x128xf32> to vector<8x32xf32>
    %60 = vector.extract_strided_slice %57 {offsets = [0, 32], sizes = [8, 32], strides = [1, 1]} : vector<8x128xf32> to vector<8x32xf32>
    %61 = vector.extract_strided_slice %58 {offsets = [0, 64], sizes = [8, 32], strides = [1, 1]} : vector<8x128xf32> to vector<8x32xf32>
    %62 = vector.extract_strided_slice %57 {offsets = [0, 96], sizes = [8, 32], strides = [1, 1]} : vector<8x128xf32> to vector<8x32xf32>
    %63 = arith.mulf %60, %28 : vector<8x32xf32>
    %64 = arith.mulf %59, %61 : vector<8x32xf32>
    %65 = arith.addf %63, %64 : vector<8x32xf32>
    %66 = math.tanh %65 : vector<8x32xf32>
    %67 = arith.mulf %62, %66 : vector<8x32xf32>
    %68 = tpu.concatenate %67, %49 in 1 : vector<8x32xf32>, vector<8x32xf32> -> vector<8x64xf32>
    %cst_21 = arith.constant dense<0.000000e+00> : vector<8x128xf32>
    %69 = tpu.matmul %68, %7, %cst_21 {dimension_numbers = #tpu.dot_dimension_numbers<[1], [0], [0], [1], [0, 0, 1, 1], [], []>} : vector<8x64xf32>, vector<64x128xf32>, vector<8x128xf32> -> vector<8x128xf32>
    %70 = vector.broadcast %8 : vector<1x128xf32> to vector<8x128xf32>
    %71 = arith.addf %69, %70 : vector<8x128xf32>
    %72 = arith.negf %71 : vector<8x128xf32>
    %73 = math.exp %72 : vector<8x128xf32>
    %cst_22 = arith.constant 1.000000e+00 : f32
    %74 = vector.broadcast %cst_22 : f32 to vector<8x128xf32>
    %75 = arith.addf %74, %73 : vector<8x128xf32>
    %76 = arith.divf %74, %75 : vector<8x128xf32>
    %77 = math.tanh %71 : vector<8x128xf32>
    %78 = vector.extract_strided_slice %76 {offsets = [0, 0], sizes = [8, 32], strides = [1, 1]} : vector<8x128xf32> to vector<8x32xf32>
    %79 = vector.extract_strided_slice %76 {offsets = [0, 32], sizes = [8, 32], strides = [1, 1]} : vector<8x128xf32> to vector<8x32xf32>
    %80 = vector.extract_strided_slice %77 {offsets = [0, 64], sizes = [8, 32], strides = [1, 1]} : vector<8x128xf32> to vector<8x32xf32>
    %81 = vector.extract_strided_slice %76 {offsets = [0, 96], sizes = [8, 32], strides = [1, 1]} : vector<8x128xf32> to vector<8x32xf32>
    %82 = arith.mulf %79, %47 : vector<8x32xf32>
    %83 = arith.mulf %78, %80 : vector<8x32xf32>
    %84 = arith.addf %82, %83 : vector<8x32xf32>
    %85 = math.tanh %84 : vector<8x32xf32>
    %86 = arith.mulf %81, %85 : vector<8x32xf32>
    %87 = vector.extract_strided_slice %5 {offsets = [16, 0], sizes = [8, 128], strides = [1, 1]} : vector<64x128xf32> to vector<8x128xf32>
    %cst_23 = arith.constant dense<0.000000e+00> : vector<8x128xf32>
    %88 = tpu.matmul %67, %6, %cst_23 {dimension_numbers = #tpu.dot_dimension_numbers<[1], [0], [0], [1], [0, 0, 1, 1], [], []>} : vector<8x32xf32>, vector<32x128xf32>, vector<8x128xf32> -> vector<8x128xf32>
    %89 = arith.addf %87, %88 : vector<8x128xf32>
    %90 = arith.negf %89 : vector<8x128xf32>
    %91 = math.exp %90 : vector<8x128xf32>
    %cst_24 = arith.constant 1.000000e+00 : f32
    %92 = vector.broadcast %cst_24 : f32 to vector<8x128xf32>
    %93 = arith.addf %92, %91 : vector<8x128xf32>
    %94 = arith.divf %92, %93 : vector<8x128xf32>
    %95 = math.tanh %89 : vector<8x128xf32>
    %96 = vector.extract_strided_slice %94 {offsets = [0, 0], sizes = [8, 32], strides = [1, 1]} : vector<8x128xf32> to vector<8x32xf32>
    %97 = vector.extract_strided_slice %94 {offsets = [0, 32], sizes = [8, 32], strides = [1, 1]} : vector<8x128xf32> to vector<8x32xf32>
    %98 = vector.extract_strided_slice %95 {offsets = [0, 64], sizes = [8, 32], strides = [1, 1]} : vector<8x128xf32> to vector<8x32xf32>
    %99 = vector.extract_strided_slice %94 {offsets = [0, 96], sizes = [8, 32], strides = [1, 1]} : vector<8x128xf32> to vector<8x32xf32>
    %100 = arith.mulf %97, %65 : vector<8x32xf32>
    %101 = arith.mulf %96, %98 : vector<8x32xf32>
    %102 = arith.addf %100, %101 : vector<8x32xf32>
    %103 = math.tanh %102 : vector<8x32xf32>
    %104 = arith.mulf %99, %103 : vector<8x32xf32>
    %105 = tpu.concatenate %104, %86 in 1 : vector<8x32xf32>, vector<8x32xf32> -> vector<8x64xf32>
    %cst_25 = arith.constant dense<0.000000e+00> : vector<8x128xf32>
    %106 = tpu.matmul %105, %7, %cst_25 {dimension_numbers = #tpu.dot_dimension_numbers<[1], [0], [0], [1], [0, 0, 1, 1], [], []>} : vector<8x64xf32>, vector<64x128xf32>, vector<8x128xf32> -> vector<8x128xf32>
    %107 = vector.broadcast %8 : vector<1x128xf32> to vector<8x128xf32>
    %108 = arith.addf %106, %107 : vector<8x128xf32>
    %109 = arith.negf %108 : vector<8x128xf32>
    %110 = math.exp %109 : vector<8x128xf32>
    %cst_26 = arith.constant 1.000000e+00 : f32
    %111 = vector.broadcast %cst_26 : f32 to vector<8x128xf32>
    %112 = arith.addf %111, %110 : vector<8x128xf32>
    %113 = arith.divf %111, %112 : vector<8x128xf32>
    %114 = math.tanh %108 : vector<8x128xf32>
    %115 = vector.extract_strided_slice %113 {offsets = [0, 0], sizes = [8, 32], strides = [1, 1]} : vector<8x128xf32> to vector<8x32xf32>
    %116 = vector.extract_strided_slice %113 {offsets = [0, 32], sizes = [8, 32], strides = [1, 1]} : vector<8x128xf32> to vector<8x32xf32>
    %117 = vector.extract_strided_slice %114 {offsets = [0, 64], sizes = [8, 32], strides = [1, 1]} : vector<8x128xf32> to vector<8x32xf32>
    %118 = vector.extract_strided_slice %113 {offsets = [0, 96], sizes = [8, 32], strides = [1, 1]} : vector<8x128xf32> to vector<8x32xf32>
    %119 = arith.mulf %116, %84 : vector<8x32xf32>
    %120 = arith.mulf %115, %117 : vector<8x32xf32>
    %121 = arith.addf %119, %120 : vector<8x32xf32>
    %122 = math.tanh %121 : vector<8x32xf32>
    %123 = arith.mulf %118, %122 : vector<8x32xf32>
    %124 = vector.extract_strided_slice %5 {offsets = [24, 0], sizes = [8, 128], strides = [1, 1]} : vector<64x128xf32> to vector<8x128xf32>
    %cst_27 = arith.constant dense<0.000000e+00> : vector<8x128xf32>
    %125 = tpu.matmul %104, %6, %cst_27 {dimension_numbers = #tpu.dot_dimension_numbers<[1], [0], [0], [1], [0, 0, 1, 1], [], []>} : vector<8x32xf32>, vector<32x128xf32>, vector<8x128xf32> -> vector<8x128xf32>
    %126 = arith.addf %124, %125 : vector<8x128xf32>
    %127 = arith.negf %126 : vector<8x128xf32>
    %128 = math.exp %127 : vector<8x128xf32>
    %cst_28 = arith.constant 1.000000e+00 : f32
    %129 = vector.broadcast %cst_28 : f32 to vector<8x128xf32>
    %130 = arith.addf %129, %128 : vector<8x128xf32>
    %131 = arith.divf %129, %130 : vector<8x128xf32>
    %132 = math.tanh %126 : vector<8x128xf32>
    %133 = vector.extract_strided_slice %131 {offsets = [0, 0], sizes = [8, 32], strides = [1, 1]} : vector<8x128xf32> to vector<8x32xf32>
    %134 = vector.extract_strided_slice %131 {offsets = [0, 32], sizes = [8, 32], strides = [1, 1]} : vector<8x128xf32> to vector<8x32xf32>
    %135 = vector.extract_strided_slice %132 {offsets = [0, 64], sizes = [8, 32], strides = [1, 1]} : vector<8x128xf32> to vector<8x32xf32>
    %136 = vector.extract_strided_slice %131 {offsets = [0, 96], sizes = [8, 32], strides = [1, 1]} : vector<8x128xf32> to vector<8x32xf32>
    %137 = arith.mulf %134, %102 : vector<8x32xf32>
    %138 = arith.mulf %133, %135 : vector<8x32xf32>
    %139 = arith.addf %137, %138 : vector<8x32xf32>
    %140 = math.tanh %139 : vector<8x32xf32>
    %141 = arith.mulf %136, %140 : vector<8x32xf32>
    %142 = tpu.concatenate %141, %123 in 1 : vector<8x32xf32>, vector<8x32xf32> -> vector<8x64xf32>
    %cst_29 = arith.constant dense<0.000000e+00> : vector<8x128xf32>
    %143 = tpu.matmul %142, %7, %cst_29 {dimension_numbers = #tpu.dot_dimension_numbers<[1], [0], [0], [1], [0, 0, 1, 1], [], []>} : vector<8x64xf32>, vector<64x128xf32>, vector<8x128xf32> -> vector<8x128xf32>
    %144 = vector.broadcast %8 : vector<1x128xf32> to vector<8x128xf32>
    %145 = arith.addf %143, %144 : vector<8x128xf32>
    %146 = arith.negf %145 : vector<8x128xf32>
    %147 = math.exp %146 : vector<8x128xf32>
    %cst_30 = arith.constant 1.000000e+00 : f32
    %148 = vector.broadcast %cst_30 : f32 to vector<8x128xf32>
    %149 = arith.addf %148, %147 : vector<8x128xf32>
    %150 = arith.divf %148, %149 : vector<8x128xf32>
    %151 = math.tanh %145 : vector<8x128xf32>
    %152 = vector.extract_strided_slice %150 {offsets = [0, 0], sizes = [8, 32], strides = [1, 1]} : vector<8x128xf32> to vector<8x32xf32>
    %153 = vector.extract_strided_slice %150 {offsets = [0, 32], sizes = [8, 32], strides = [1, 1]} : vector<8x128xf32> to vector<8x32xf32>
    %154 = vector.extract_strided_slice %151 {offsets = [0, 64], sizes = [8, 32], strides = [1, 1]} : vector<8x128xf32> to vector<8x32xf32>
    %155 = vector.extract_strided_slice %150 {offsets = [0, 96], sizes = [8, 32], strides = [1, 1]} : vector<8x128xf32> to vector<8x32xf32>
    %156 = arith.mulf %153, %121 : vector<8x32xf32>
    %157 = arith.mulf %152, %154 : vector<8x32xf32>
    %158 = arith.addf %156, %157 : vector<8x32xf32>
    %159 = math.tanh %158 : vector<8x32xf32>
    %160 = arith.mulf %155, %159 : vector<8x32xf32>
    %161 = vector.extract_strided_slice %5 {offsets = [32, 0], sizes = [8, 128], strides = [1, 1]} : vector<64x128xf32> to vector<8x128xf32>
    %cst_31 = arith.constant dense<0.000000e+00> : vector<8x128xf32>
    %162 = tpu.matmul %141, %6, %cst_31 {dimension_numbers = #tpu.dot_dimension_numbers<[1], [0], [0], [1], [0, 0, 1, 1], [], []>} : vector<8x32xf32>, vector<32x128xf32>, vector<8x128xf32> -> vector<8x128xf32>
    %163 = arith.addf %161, %162 : vector<8x128xf32>
    %164 = arith.negf %163 : vector<8x128xf32>
    %165 = math.exp %164 : vector<8x128xf32>
    %cst_32 = arith.constant 1.000000e+00 : f32
    %166 = vector.broadcast %cst_32 : f32 to vector<8x128xf32>
    %167 = arith.addf %166, %165 : vector<8x128xf32>
    %168 = arith.divf %166, %167 : vector<8x128xf32>
    %169 = math.tanh %163 : vector<8x128xf32>
    %170 = vector.extract_strided_slice %168 {offsets = [0, 0], sizes = [8, 32], strides = [1, 1]} : vector<8x128xf32> to vector<8x32xf32>
    %171 = vector.extract_strided_slice %168 {offsets = [0, 32], sizes = [8, 32], strides = [1, 1]} : vector<8x128xf32> to vector<8x32xf32>
    %172 = vector.extract_strided_slice %169 {offsets = [0, 64], sizes = [8, 32], strides = [1, 1]} : vector<8x128xf32> to vector<8x32xf32>
    %173 = vector.extract_strided_slice %168 {offsets = [0, 96], sizes = [8, 32], strides = [1, 1]} : vector<8x128xf32> to vector<8x32xf32>
    %174 = arith.mulf %171, %139 : vector<8x32xf32>
    %175 = arith.mulf %170, %172 : vector<8x32xf32>
    %176 = arith.addf %174, %175 : vector<8x32xf32>
    %177 = math.tanh %176 : vector<8x32xf32>
    %178 = arith.mulf %173, %177 : vector<8x32xf32>
    %179 = tpu.concatenate %178, %160 in 1 : vector<8x32xf32>, vector<8x32xf32> -> vector<8x64xf32>
    %cst_33 = arith.constant dense<0.000000e+00> : vector<8x128xf32>
    %180 = tpu.matmul %179, %7, %cst_33 {dimension_numbers = #tpu.dot_dimension_numbers<[1], [0], [0], [1], [0, 0, 1, 1], [], []>} : vector<8x64xf32>, vector<64x128xf32>, vector<8x128xf32> -> vector<8x128xf32>
    %181 = vector.broadcast %8 : vector<1x128xf32> to vector<8x128xf32>
    %182 = arith.addf %180, %181 : vector<8x128xf32>
    %183 = arith.negf %182 : vector<8x128xf32>
    %184 = math.exp %183 : vector<8x128xf32>
    %cst_34 = arith.constant 1.000000e+00 : f32
    %185 = vector.broadcast %cst_34 : f32 to vector<8x128xf32>
    %186 = arith.addf %185, %184 : vector<8x128xf32>
    %187 = arith.divf %185, %186 : vector<8x128xf32>
    %188 = math.tanh %182 : vector<8x128xf32>
    %189 = vector.extract_strided_slice %187 {offsets = [0, 0], sizes = [8, 32], strides = [1, 1]} : vector<8x128xf32> to vector<8x32xf32>
    %190 = vector.extract_strided_slice %187 {offsets = [0, 32], sizes = [8, 32], strides = [1, 1]} : vector<8x128xf32> to vector<8x32xf32>
    %191 = vector.extract_strided_slice %188 {offsets = [0, 64], sizes = [8, 32], strides = [1, 1]} : vector<8x128xf32> to vector<8x32xf32>
    %192 = vector.extract_strided_slice %187 {offsets = [0, 96], sizes = [8, 32], strides = [1, 1]} : vector<8x128xf32> to vector<8x32xf32>
    %193 = arith.mulf %190, %158 : vector<8x32xf32>
    %194 = arith.mulf %189, %191 : vector<8x32xf32>
    %195 = arith.addf %193, %194 : vector<8x32xf32>
    %196 = math.tanh %195 : vector<8x32xf32>
    %197 = arith.mulf %192, %196 : vector<8x32xf32>
    %198 = vector.extract_strided_slice %5 {offsets = [40, 0], sizes = [8, 128], strides = [1, 1]} : vector<64x128xf32> to vector<8x128xf32>
    %cst_35 = arith.constant dense<0.000000e+00> : vector<8x128xf32>
    %199 = tpu.matmul %178, %6, %cst_35 {dimension_numbers = #tpu.dot_dimension_numbers<[1], [0], [0], [1], [0, 0, 1, 1], [], []>} : vector<8x32xf32>, vector<32x128xf32>, vector<8x128xf32> -> vector<8x128xf32>
    %200 = arith.addf %198, %199 : vector<8x128xf32>
    %201 = arith.negf %200 : vector<8x128xf32>
    %202 = math.exp %201 : vector<8x128xf32>
    %cst_36 = arith.constant 1.000000e+00 : f32
    %203 = vector.broadcast %cst_36 : f32 to vector<8x128xf32>
    %204 = arith.addf %203, %202 : vector<8x128xf32>
    %205 = arith.divf %203, %204 : vector<8x128xf32>
    %206 = math.tanh %200 : vector<8x128xf32>
    %207 = vector.extract_strided_slice %205 {offsets = [0, 0], sizes = [8, 32], strides = [1, 1]} : vector<8x128xf32> to vector<8x32xf32>
    %208 = vector.extract_strided_slice %205 {offsets = [0, 32], sizes = [8, 32], strides = [1, 1]} : vector<8x128xf32> to vector<8x32xf32>
    %209 = vector.extract_strided_slice %206 {offsets = [0, 64], sizes = [8, 32], strides = [1, 1]} : vector<8x128xf32> to vector<8x32xf32>
    %210 = vector.extract_strided_slice %205 {offsets = [0, 96], sizes = [8, 32], strides = [1, 1]} : vector<8x128xf32> to vector<8x32xf32>
    %211 = arith.mulf %208, %176 : vector<8x32xf32>
    %212 = arith.mulf %207, %209 : vector<8x32xf32>
    %213 = arith.addf %211, %212 : vector<8x32xf32>
    %214 = math.tanh %213 : vector<8x32xf32>
    %215 = arith.mulf %210, %214 : vector<8x32xf32>
    %216 = tpu.concatenate %215, %197 in 1 : vector<8x32xf32>, vector<8x32xf32> -> vector<8x64xf32>
    %cst_37 = arith.constant dense<0.000000e+00> : vector<8x128xf32>
    %217 = tpu.matmul %216, %7, %cst_37 {dimension_numbers = #tpu.dot_dimension_numbers<[1], [0], [0], [1], [0, 0, 1, 1], [], []>} : vector<8x64xf32>, vector<64x128xf32>, vector<8x128xf32> -> vector<8x128xf32>
    %218 = vector.broadcast %8 : vector<1x128xf32> to vector<8x128xf32>
    %219 = arith.addf %217, %218 : vector<8x128xf32>
    %220 = arith.negf %219 : vector<8x128xf32>
    %221 = math.exp %220 : vector<8x128xf32>
    %cst_38 = arith.constant 1.000000e+00 : f32
    %222 = vector.broadcast %cst_38 : f32 to vector<8x128xf32>
    %223 = arith.addf %222, %221 : vector<8x128xf32>
    %224 = arith.divf %222, %223 : vector<8x128xf32>
    %225 = math.tanh %219 : vector<8x128xf32>
    %226 = vector.extract_strided_slice %224 {offsets = [0, 0], sizes = [8, 32], strides = [1, 1]} : vector<8x128xf32> to vector<8x32xf32>
    %227 = vector.extract_strided_slice %224 {offsets = [0, 32], sizes = [8, 32], strides = [1, 1]} : vector<8x128xf32> to vector<8x32xf32>
    %228 = vector.extract_strided_slice %225 {offsets = [0, 64], sizes = [8, 32], strides = [1, 1]} : vector<8x128xf32> to vector<8x32xf32>
    %229 = vector.extract_strided_slice %224 {offsets = [0, 96], sizes = [8, 32], strides = [1, 1]} : vector<8x128xf32> to vector<8x32xf32>
    %230 = arith.mulf %227, %195 : vector<8x32xf32>
    %231 = arith.mulf %226, %228 : vector<8x32xf32>
    %232 = arith.addf %230, %231 : vector<8x32xf32>
    %233 = math.tanh %232 : vector<8x32xf32>
    %234 = arith.mulf %229, %233 : vector<8x32xf32>
    %235 = vector.extract_strided_slice %5 {offsets = [48, 0], sizes = [8, 128], strides = [1, 1]} : vector<64x128xf32> to vector<8x128xf32>
    %cst_39 = arith.constant dense<0.000000e+00> : vector<8x128xf32>
    %236 = tpu.matmul %215, %6, %cst_39 {dimension_numbers = #tpu.dot_dimension_numbers<[1], [0], [0], [1], [0, 0, 1, 1], [], []>} : vector<8x32xf32>, vector<32x128xf32>, vector<8x128xf32> -> vector<8x128xf32>
    %237 = arith.addf %235, %236 : vector<8x128xf32>
    %238 = arith.negf %237 : vector<8x128xf32>
    %239 = math.exp %238 : vector<8x128xf32>
    %cst_40 = arith.constant 1.000000e+00 : f32
    %240 = vector.broadcast %cst_40 : f32 to vector<8x128xf32>
    %241 = arith.addf %240, %239 : vector<8x128xf32>
    %242 = arith.divf %240, %241 : vector<8x128xf32>
    %243 = math.tanh %237 : vector<8x128xf32>
    %244 = vector.extract_strided_slice %242 {offsets = [0, 0], sizes = [8, 32], strides = [1, 1]} : vector<8x128xf32> to vector<8x32xf32>
    %245 = vector.extract_strided_slice %242 {offsets = [0, 32], sizes = [8, 32], strides = [1, 1]} : vector<8x128xf32> to vector<8x32xf32>
    %246 = vector.extract_strided_slice %243 {offsets = [0, 64], sizes = [8, 32], strides = [1, 1]} : vector<8x128xf32> to vector<8x32xf32>
    %247 = vector.extract_strided_slice %242 {offsets = [0, 96], sizes = [8, 32], strides = [1, 1]} : vector<8x128xf32> to vector<8x32xf32>
    %248 = arith.mulf %245, %213 : vector<8x32xf32>
    %249 = arith.mulf %244, %246 : vector<8x32xf32>
    %250 = arith.addf %248, %249 : vector<8x32xf32>
    %251 = math.tanh %250 : vector<8x32xf32>
    %252 = arith.mulf %247, %251 : vector<8x32xf32>
    %253 = tpu.concatenate %252, %234 in 1 : vector<8x32xf32>, vector<8x32xf32> -> vector<8x64xf32>
    %cst_41 = arith.constant dense<0.000000e+00> : vector<8x128xf32>
    %254 = tpu.matmul %253, %7, %cst_41 {dimension_numbers = #tpu.dot_dimension_numbers<[1], [0], [0], [1], [0, 0, 1, 1], [], []>} : vector<8x64xf32>, vector<64x128xf32>, vector<8x128xf32> -> vector<8x128xf32>
    %255 = vector.broadcast %8 : vector<1x128xf32> to vector<8x128xf32>
    %256 = arith.addf %254, %255 : vector<8x128xf32>
    %257 = arith.negf %256 : vector<8x128xf32>
    %258 = math.exp %257 : vector<8x128xf32>
    %cst_42 = arith.constant 1.000000e+00 : f32
    %259 = vector.broadcast %cst_42 : f32 to vector<8x128xf32>
    %260 = arith.addf %259, %258 : vector<8x128xf32>
    %261 = arith.divf %259, %260 : vector<8x128xf32>
    %262 = math.tanh %256 : vector<8x128xf32>
    %263 = vector.extract_strided_slice %261 {offsets = [0, 0], sizes = [8, 32], strides = [1, 1]} : vector<8x128xf32> to vector<8x32xf32>
    %264 = vector.extract_strided_slice %261 {offsets = [0, 32], sizes = [8, 32], strides = [1, 1]} : vector<8x128xf32> to vector<8x32xf32>
    %265 = vector.extract_strided_slice %262 {offsets = [0, 64], sizes = [8, 32], strides = [1, 1]} : vector<8x128xf32> to vector<8x32xf32>
    %266 = vector.extract_strided_slice %261 {offsets = [0, 96], sizes = [8, 32], strides = [1, 1]} : vector<8x128xf32> to vector<8x32xf32>
    %267 = arith.mulf %264, %232 : vector<8x32xf32>
    %268 = arith.mulf %263, %265 : vector<8x32xf32>
    %269 = arith.addf %267, %268 : vector<8x32xf32>
    %270 = math.tanh %269 : vector<8x32xf32>
    %271 = arith.mulf %266, %270 : vector<8x32xf32>
    %272 = vector.extract_strided_slice %5 {offsets = [56, 0], sizes = [8, 128], strides = [1, 1]} : vector<64x128xf32> to vector<8x128xf32>
    %cst_43 = arith.constant dense<0.000000e+00> : vector<8x128xf32>
    %273 = tpu.matmul %252, %6, %cst_43 {dimension_numbers = #tpu.dot_dimension_numbers<[1], [0], [0], [1], [0, 0, 1, 1], [], []>} : vector<8x32xf32>, vector<32x128xf32>, vector<8x128xf32> -> vector<8x128xf32>
    %274 = arith.addf %272, %273 : vector<8x128xf32>
    %275 = arith.negf %274 : vector<8x128xf32>
    %276 = math.exp %275 : vector<8x128xf32>
    %cst_44 = arith.constant 1.000000e+00 : f32
    %277 = vector.broadcast %cst_44 : f32 to vector<8x128xf32>
    %278 = arith.addf %277, %276 : vector<8x128xf32>
    %279 = arith.divf %277, %278 : vector<8x128xf32>
    %280 = math.tanh %274 : vector<8x128xf32>
    %281 = vector.extract_strided_slice %279 {offsets = [0, 0], sizes = [8, 32], strides = [1, 1]} : vector<8x128xf32> to vector<8x32xf32>
    %282 = vector.extract_strided_slice %279 {offsets = [0, 32], sizes = [8, 32], strides = [1, 1]} : vector<8x128xf32> to vector<8x32xf32>
    %283 = vector.extract_strided_slice %280 {offsets = [0, 64], sizes = [8, 32], strides = [1, 1]} : vector<8x128xf32> to vector<8x32xf32>
    %284 = vector.extract_strided_slice %279 {offsets = [0, 96], sizes = [8, 32], strides = [1, 1]} : vector<8x128xf32> to vector<8x32xf32>
    %285 = arith.mulf %282, %250 : vector<8x32xf32>
    %286 = arith.mulf %281, %283 : vector<8x32xf32>
    %287 = arith.addf %285, %286 : vector<8x32xf32>
    %288 = math.tanh %287 : vector<8x32xf32>
    %289 = arith.mulf %284, %288 : vector<8x32xf32>
    %290 = tpu.concatenate %289, %271 in 1 : vector<8x32xf32>, vector<8x32xf32> -> vector<8x64xf32>
    %cst_45 = arith.constant dense<0.000000e+00> : vector<8x128xf32>
    %291 = tpu.matmul %290, %7, %cst_45 {dimension_numbers = #tpu.dot_dimension_numbers<[1], [0], [0], [1], [0, 0, 1, 1], [], []>} : vector<8x64xf32>, vector<64x128xf32>, vector<8x128xf32> -> vector<8x128xf32>
    %292 = vector.broadcast %8 : vector<1x128xf32> to vector<8x128xf32>
    %293 = arith.addf %291, %292 : vector<8x128xf32>
    %294 = arith.negf %293 : vector<8x128xf32>
    %295 = math.exp %294 : vector<8x128xf32>
    %cst_46 = arith.constant 1.000000e+00 : f32
    %296 = vector.broadcast %cst_46 : f32 to vector<8x128xf32>
    %297 = arith.addf %296, %295 : vector<8x128xf32>
    %298 = arith.divf %296, %297 : vector<8x128xf32>
    %299 = math.tanh %293 : vector<8x128xf32>
    %300 = vector.extract_strided_slice %298 {offsets = [0, 0], sizes = [8, 32], strides = [1, 1]} : vector<8x128xf32> to vector<8x32xf32>
    %301 = vector.extract_strided_slice %298 {offsets = [0, 32], sizes = [8, 32], strides = [1, 1]} : vector<8x128xf32> to vector<8x32xf32>
    %302 = vector.extract_strided_slice %299 {offsets = [0, 64], sizes = [8, 32], strides = [1, 1]} : vector<8x128xf32> to vector<8x32xf32>
    %303 = vector.extract_strided_slice %298 {offsets = [0, 96], sizes = [8, 32], strides = [1, 1]} : vector<8x128xf32> to vector<8x32xf32>
    %304 = arith.mulf %301, %269 : vector<8x32xf32>
    %305 = arith.mulf %300, %302 : vector<8x32xf32>
    %306 = arith.addf %304, %305 : vector<8x32xf32>
    %307 = math.tanh %306 : vector<8x32xf32>
    %308 = arith.mulf %303, %307 : vector<8x32xf32>
    %c0_47 = arith.constant 0 : index
    %c0_48 = arith.constant 0 : index
    %309 = vector.load %arg6[%c0_47, %c0_48] : memref<1x32xf32, #tpu.memory_space<vmem>>, vector<1x32xf32>
    %310 = vector.broadcast %309 : vector<1x32xf32> to vector<8x32xf32>
    %311 = arith.mulf %308, %310 : vector<8x32xf32>
    %cst_49 = arith.constant dense<0.000000e+00> : vector<8xf32>
    %312 = vector.multi_reduction <add>, %311, %cst_49 [1] : vector<8x32xf32> to vector<8xf32>
    %313 = vector.shape_cast %312 : vector<8xf32> to vector<8x1xf32>
    %c0_50 = arith.constant 0 : index
    %c0_51 = arith.constant 0 : index
    %314 = vector.load %arg7[%c0_50, %c0_51] : memref<1x1xf32, #tpu.memory_space<vmem>>, vector<1x1xf32>
    %315 = vector.broadcast %314 : vector<1x1xf32> to vector<8x1xf32>
    %316 = arith.addf %313, %315 : vector<8x1xf32>
    %c0_52 = arith.constant 0 : index
    %c0_53 = arith.constant 0 : index
    %317 = vector.load %arg8[%c0_52, %c0_53] : memref<8x1xf32, #tpu.memory_space<vmem>>, vector<8x1xf32>
    tpu.vector_store %arg8[%c0_52, %c0_53], %316 {strides = array<i32>} : memref<8x1xf32, #tpu.memory_space<vmem>>, vector<8x1xf32>,
    return
  }
}

</mosaic_0001>

<llo_original>
// kernel: tpu_custom_call.1
$region0: #{tpu_custom_call.1}
  #allocation0 [shape = 'u32[]', space=smem, size = 0x4, offset = 0x4, fixed_abs, tag = 'smem constant byte address 0x4 - core index']
  #allocation1 [shape = 'u32[144,128]{1,0:T(1,128)}', space=vmem, size = 0x12000, scoped, tag = 'internal scratch']
  #allocation2 [shape = 'f32[1,1]{1,0:T(1,128)S(1)}', space=vmem, size = 0x200, scoped, tag = 'scoped memory for tpu_custom_call.1']
  %s0 = inlined_call_operand.vmem [shape: f32[64,16], index: 0, kind: input, shape index: {}]
  %s1 = inlined_call_operand.hbm [shape: f32[16,128], index: 1, kind: input, shape index: {}]
  %s2 = inlined_call_operand.vmem [shape: f32[32,128], index: 2, kind: input, shape index: {}]
  %s3 = inlined_call_operand.vmem [shape: f32[1,128], index: 3, kind: input, shape index: {}]
  %s4 = inlined_call_operand.vmem [shape: f32[64,128], index: 4, kind: input, shape index: {}]
  %s5 = inlined_call_operand.vmem [shape: f32[1,128], index: 5, kind: input, shape index: {}]
  %s6 = inlined_call_operand.vmem [shape: f32[1,32], index: 6, kind: input, shape index: {}]
  %s7 = inlined_call_operand.<no memory space> [shape: f32[1,1], index: 7, kind: input, shape index: {}]
  %s8 = inlined_call_operand.vmem [shape: f32[8,1], index: 8, kind: output, shape index: {}]
  %s9 = sld [smem:[#allocation0]]
  $region46: #{tpu_custom_call.1} parent=0
    _
  %s11 = ssub.s32 1, %s9
  %s12 = scalar_select 0, %s11, %s9
  %v13 = vstv %s7
  %14 = vst [vmem:[#allocation2] sm:$0x1] %v13
  $region1: #{tpu_custom_call.1} parent=0
    #allocation3 [shape = 'u8[8192]{0}', space=vmem, size = 0x2000, scoped, tag = 'input window, operand 1, single buffered']
    #allocation4 [shape = 's32[1]{0}', space=sflag, size = 0x4, scoped, tag = 'scoped memory for tpu_custom_call.1']
    %15 = vsyncpa [#allocation4], 0
    // Predicated region
    $region2: #{tpu_custom_call.1} parent=1 // pred_check
      _
    $region3: #{tpu_custom_call.1} parent=1 // pred_check_branch
      %17 = sbr.rel (0) target = $region5
    $region4: #{tpu_custom_call.1} parent=1 // pred_region
      _
    $region5: #{tpu_custom_call.1} parent=1 // pred_fallthru
      _
    // Predicated region
    $region6: #{tpu_custom_call.1} parent=1 // pred_check
      _
    $region7: #{tpu_custom_call.1} parent=1 // pred_check_branch
      %19 = sbr.rel (0) target = $region9
    $region8: #{tpu_custom_call.1} parent=1 // pred_region
      %s21 = ssub.s32 256, 256
      %22 = vsyncadd [#allocation4], %s21
      %s23 = sshll.u32 [#allocation3], 4
      %s24 = int_to_ptr.vmem [resolvable:$true] %s23
      %29 = dma.hbm_to_vmem [thread:$0]  %s1, 256, %s24, [#allocation4], 128, 128, 8
    $region9: #{tpu_custom_call.1} parent=1 // pred_fallthru
      _
    // Predicated region
    $region10: #{tpu_custom_call.1} parent=1 // pred_check
      _
    $region11: #{tpu_custom_call.1} parent=1 // pred_check_branch
      %31 = sbr.rel (0) target = $region13
    $region12: #{tpu_custom_call.1} parent=1 // pred_region
      _
    $region13: #{tpu_custom_call.1} parent=1 // pred_fallthru
      _
    // Predicated region
    $region14: #{tpu_custom_call.1} parent=1 // pred_check
      _
    $region15: #{tpu_custom_call.1} parent=1 // pred_check_branch
      %33 = sbr.rel (0) target = $region17
    $region16: #{tpu_custom_call.1} parent=1 // pred_region
      _
    $region17: #{tpu_custom_call.1} parent=1 // pred_fallthru
      _
    // Predicated region
    $region18: #{tpu_custom_call.1} parent=1 // pred_check
      _
    $region19: #{tpu_custom_call.1} parent=1 // pred_check_branch
      %35 = sbr.rel (0) target = $region21
    $region20: #{tpu_custom_call.1} parent=1 // pred_region
      _
    $region21: #{tpu_custom_call.1} parent=1 // pred_fallthru
      _
    // Predicated region
    $region22: #{tpu_custom_call.1} parent=1 // pred_check
      _
    $region23: #{tpu_custom_call.1} parent=1 // pred_check_branch
      %37 = sbr.rel (0) target = $region25
    $region24: #{tpu_custom_call.1} parent=1 // pred_region
      _
    $region25: #{tpu_custom_call.1} parent=1 // pred_fallthru
      _
    // Predicated region
    $region26: #{tpu_custom_call.1} parent=1 // pred_check
      _
    $region27: #{tpu_custom_call.1} parent=1 // pred_check_branch
      %39 = sbr.rel (0) target = $region29
    $region28: #{tpu_custom_call.1} parent=1 // pred_region
      _
    $region29: #{tpu_custom_call.1} parent=1 // pred_fallthru
      _
    // Predicated region
    $region30: #{tpu_custom_call.1} parent=1 // pred_check
      _
    $region31: #{tpu_custom_call.1} parent=1 // pred_check_branch
      %41 = sbr.rel (0) target = $region33
    $region32: #{tpu_custom_call.1} parent=1 // pred_region
      _
    $region33: #{tpu_custom_call.1} parent=1 // pred_fallthru
      _
    // Predicated region
    $region34: #{tpu_custom_call.1} parent=1 // pred_check
      _
    $region35: #{tpu_custom_call.1} parent=1 // pred_check_branch
      %43 = sbr.rel (0) target = $region37
    $region36: #{tpu_custom_call.1} parent=1 // pred_region
      %44 = dma.done [#allocation4], 256
    $region37: #{tpu_custom_call.1} parent=1 // pred_fallthru
      _
    %v45 = vld [vmem:[%s0] sm:$0xff]
    %v46 = vld [vmem:[%s0 + $0x8] sm:$0xff]
    %v47 = vld [vmem:[%s0 + $0x10] sm:$0xff]
    %v48 = vld [vmem:[%s0 + $0x18] sm:$0xff]
    %v49 = vld [vmem:[%s0 + $0x20] sm:$0xff]
    %v50 = vld [vmem:[%s0 + $0x28] sm:$0xff]
    %v51 = vld [vmem:[%s0 + $0x30] sm:$0xff]
    %v52 = vld [vmem:[%s0 + $0x38] sm:$0xff]
    %v53 = vld [vmem:[#allocation3] sm:$0xff]
    %v54 = vld [vmem:[#allocation3 + $0x8] sm:$0xff]
    %v55 = vld [vmem:[%s3] sm:$0x1]
    %v57 = vlaneseq
    %v58 = vshrl.u32 %v57, 7
    %v59 = vsub.s32 0, %v58
    %v60 = vrot.slane %v55, %v59
    %vm62 = vcmask 130048
    %v64 = vsel %vm62, %v45, 0
    %v67 = vsel %vm62, %v46, 0
    %v70 = vsel %vm62, %v47, 0
    %v73 = vsel %vm62, %v48, 0
    %v76 = vsel %vm62, %v49, 0
    %v79 = vsel %vm62, %v50, 0
    %v82 = vsel %vm62, %v51, 0
    %v85 = vsel %vm62, %v52, 0
    %87 = vmatprep.subr.mxu0 0.0
    %88 = vmatpush1.msra.mxu0 %v53
    %89 = vmatprep.subr.mxu0 0.0
    %90 = vmatpush1.msra.mxu0 %v54
    %91 = vmatprep.subr.mxu0 0.0
    %92 = vmatpush1.msra.mxu0 0.0
    %93 = vmatprep.subr.mxu0 0.0
    %94 = vmatpush1.msra.mxu0 0.0
    %95 = vmatprep.subr.mxu0 0.0
    %96 = vmatpush1.msra.mxu0 0.0
    %97 = vmatprep.subr.mxu0 0.0
    %98 = vmatpush1.msra.mxu0 0.0
    %99 = vmatprep.subr.mxu0 0.0
    %100 = vmatpush1.msra.mxu0 0.0
    %101 = vmatprep.subr.mxu0 0.0
    %102 = vmatpush1.msra.mxu0 0.0
    %103 = vmatprep.subr.mxu0 0.0
    %104 = vmatpush1.msra.mxu0 0.0
    %105 = vmatprep.subr.mxu0 0.0
    %106 = vmatpush1.msra.mxu0 0.0
    %107 = vmatprep.subr.mxu0 0.0
    %108 = vmatpush1.msra.mxu0 0.0
    %109 = vmatprep.subr.mxu0 0.0
    %110 = vmatpush1.msra.mxu0 0.0
    %111 = vmatprep.subr.mxu0 0.0
    %112 = vmatpush1.msra.mxu0 0.0
    %113 = vmatprep.subr.mxu0 0.0
    %114 = vmatpush1.msra.mxu0 0.0
    %115 = vmatprep.subr.mxu0 0.0
    %116 = vmatpush1.msra.mxu0 0.0
    %117 = vmatprep.subr.mxu0 0.0
    %118 = vmatpush1.msra.mxu0 0.0
    %119 = vmatprep.subr.mxu0 0.0
    %120 = vmatpush1.msra.mxu0 0.0
    %121 = vmatprep.subr.mxu0 0.0
    %122 = vmatpush1.msra.mxu0 0.0
    %123 = vmatprep.subr.mxu0 0.0
    %124 = vmatpush1.msra.mxu0 0.0
    %125 = vmatprep.subr.mxu0 0.0
    %126 = vmatpush1.msra.mxu0 0.0
    %127 = vmatprep.subr.mxu0 0.0
    %128 = vmatpush1.msra.mxu0 0.0
    %129 = vmatprep.subr.mxu0 0.0
    %130 = vmatpush1.msra.mxu0 0.0
    %131 = vmatprep.subr.mxu0 0.0
    %132 = vmatpush1.msra.mxu0 0.0
    %133 = vmatprep.subr.mxu0 0.0
    %134 = vmatpush1.msra.mxu0 0.0
    %135 = vmatprep.subr.mxu0 0.0
    %136 = vmatpush1.msra.mxu0 0.0
    %137 = vmatprep.subr.mxu0 0.0
    %138 = vmatpush1.msra.mxu0 0.0
    %139 = vmatprep.subr.mxu0 0.0
    %140 = vmatpush1.msra.mxu0 0.0
    %141 = vmatprep.subr.mxu0 0.0
    %142 = vmatpush1.msra.mxu0 0.0
    %143 = vmatprep.subr.mxu0 0.0
    %144 = vmatpush1.msra.mxu0 0.0
    %145 = vmatprep.subr.mxu0 0.0
    %146 = vmatpush1.msra.mxu0 0.0
    %147 = vmatprep.subr.mxu0 0.0
    %148 = vmatpush1.msra.mxu0 0.0
    %149 = vmatprep.subr.mxu0 0.0
    %150 = vmatpush1.msra.mxu0 0.0
    %151 = vmatprep.mubr.f32.mxu0 0.0
    %152 = vmatmul.mubr.f32.gmra.mrb[0].mxu0 %v64
    %v153 = vpop.f32.mrb[0].mxu0
    %v154 = vadd.f32 %v60, %v153
    %v155 = vpop.f32.mrb[0].mxu0
    %156 = vmatprep.mubr.f32.mxu0 0.0
    %157 = vmatmul.mubr.f32.gmra.mrb[0].mxu0 %v67
    %v158 = vpop.f32.mrb[0].mxu0
    %v159 = vadd.f32 %v60, %v158
    %v160 = vpop.f32.mrb[0].mxu0
    %161 = vmatprep.mubr.f32.mxu0 0.0
    %162 = vmatmul.mubr.f32.gmra.mrb[0].mxu0 %v70
    %v163 = vpop.f32.mrb[0].mxu0
    %v164 = vadd.f32 %v60, %v163
    %v165 = vpop.f32.mrb[0].mxu0
    %166 = vmatprep.mubr.f32.mxu0 0.0
    %167 = vmatmul.mubr.f32.gmra.mrb[0].mxu0 %v73
    %v168 = vpop.f32.mrb[0].mxu0
    %v169 = vadd.f32 %v60, %v168
    %v170 = vpop.f32.mrb[0].mxu0
    %171 = vmatprep.mubr.f32.mxu0 0.0
    %172 = vmatmul.mubr.f32.gmra.mrb[0].mxu0 %v76
    %v173 = vpop.f32.mrb[0].mxu0
    %v174 = vadd.f32 %v60, %v173
    %v175 = vpop.f32.mrb[0].mxu0
    %176 = vmatprep.mubr.f32.mxu0 0.0
    %177 = vmatmul.mubr.f32.gmra.mrb[0].mxu0 %v79
    %v178 = vpop.f32.mrb[0].mxu0
    %v179 = vadd.f32 %v60, %v178
    %v180 = vpop.f32.mrb[0].mxu0
    %181 = vmatprep.mubr.f32.mxu0 0.0
    %182 = vmatmul.mubr.f32.gmra.mrb[0].mxu0 %v82
    %v183 = vpop.f32.mrb[0].mxu0
    %v184 = vadd.f32 %v60, %v183
    %v185 = vpop.f32.mrb[0].mxu0
    %186 = vmatprep.mubr.f32.mxu0 0.0
    %187 = vmatmul.mubr.f32.gmra.mrb[0].mxu0 %v85
    %v188 = vpop.f32.mrb[0].mxu0
    %v189 = vadd.f32 %v60, %v188
    %v190 = vpop.f32.mrb[0].mxu0
    %191 = vdwg.mxu0
    %v192 = vld [vmem:[%s2] sm:$0xff]
    %v193 = vld [vmem:[%s2 + $0x8] sm:$0xff]
    %v194 = vld [vmem:[%s2 + $0x10] sm:$0xff]
    %v195 = vld [vmem:[%s2 + $0x18] sm:$0xff]
    %v196 = vld [vmem:[%s4] sm:$0xff]
    %v197 = vld [vmem:[%s4 + $0x8] sm:$0xff]
    %v198 = vld [vmem:[%s4 + $0x10] sm:$0xff]
    %v199 = vld [vmem:[%s4 + $0x18] sm:$0xff]
    %v200 = vld [vmem:[%s4 + $0x20] sm:$0xff]
    %v201 = vld [vmem:[%s4 + $0x28] sm:$0xff]
    %v202 = vld [vmem:[%s4 + $0x30] sm:$0xff]
    %v203 = vld [vmem:[%s4 + $0x38] sm:$0xff]
    %v204 = vld [vmem:[%s5] sm:$0x1]
    %vm205 = vcmask 261120
    %v207 = vsel %vm205, 0.0, 0
    %209 = vmatprep.subr.mxu0 0.0
    %210 = vmatpush1.msra.mxu0 %v192
    %211 = vmatprep.subr.mxu0 0.0
    %212 = vmatpush1.msra.mxu0 %v193
    %213 = vmatprep.subr.mxu0 0.0
    %214 = vmatpush1.msra.mxu0 %v194
    %215 = vmatprep.subr.mxu0 0.0
    %216 = vmatpush1.msra.mxu0 %v195
    %217 = vmatprep.subr.mxu0 0.0
    %218 = vmatpush1.msra.mxu0 0.0
    %219 = vmatprep.subr.mxu0 0.0
    %220 = vmatpush1.msra.mxu0 0.0
    %221 = vmatprep.subr.mxu0 0.0
    %222 = vmatpush1.msra.mxu0 0.0
    %223 = vmatprep.subr.mxu0 0.0
    %224 = vmatpush1.msra.mxu0 0.0
    %225 = vmatprep.subr.mxu0 0.0
    %226 = vmatpush1.msra.mxu0 0.0
    %227 = vmatprep.subr.mxu0 0.0
    %228 = vmatpush1.msra.mxu0 0.0
    %229 = vmatprep.subr.mxu0 0.0
    %230 = vmatpush1.msra.mxu0 0.0
    %231 = vmatprep.subr.mxu0 0.0
    %232 = vmatpush1.msra.mxu0 0.0
    %233 = vmatprep.subr.mxu0 0.0
    %234 = vmatpush1.msra.mxu0 0.0
    %235 = vmatprep.subr.mxu0 0.0
    %236 = vmatpush1.msra.mxu0 0.0
    %237 = vmatprep.subr.mxu0 0.0
    %238 = vmatpush1.msra.mxu0 0.0
    %239 = vmatprep.subr.mxu0 0.0
    %240 = vmatpush1.msra.mxu0 0.0
    %241 = vmatprep.subr.mxu0 0.0
    %242 = vmatpush1.msra.mxu0 0.0
    %243 = vmatprep.subr.mxu0 0.0
    %244 = vmatpush1.msra.mxu0 0.0
    %245 = vmatprep.subr.mxu0 0.0
    %246 = vmatpush1.msra.mxu0 0.0
    %247 = vmatprep.subr.mxu0 0.0
    %248 = vmatpush1.msra.mxu0 0.0
    %249 = vmatprep.subr.mxu0 0.0
    %250 = vmatpush1.msra.mxu0 0.0
    %251 = vmatprep.subr.mxu0 0.0
    %252 = vmatpush1.msra.mxu0 0.0
    %253 = vmatprep.subr.mxu0 0.0
    %254 = vmatpush1.msra.mxu0 0.0
    %255 = vmatprep.subr.mxu0 0.0
    %256 = vmatpush1.msra.mxu0 0.0
    %257 = vmatprep.subr.mxu0 0.0
    %258 = vmatpush1.msra.mxu0 0.0
    %259 = vmatprep.subr.mxu0 0.0
    %260 = vmatpush1.msra.mxu0 0.0
    %261 = vmatprep.subr.mxu0 0.0
    %262 = vmatpush1.msra.mxu0 0.0
    %263 = vmatprep.subr.mxu0 0.0
    %264 = vmatpush1.msra.mxu0 0.0
    %265 = vmatprep.subr.mxu0 0.0
    %266 = vmatpush1.msra.mxu0 0.0
    %267 = vmatprep.subr.mxu0 0.0
    %268 = vmatpush1.msra.mxu0 0.0
    %269 = vmatprep.subr.mxu0 0.0
    %270 = vmatpush1.msra.mxu0 0.0
    %271 = vmatprep.subr.mxu0 0.0
    %272 = vmatpush1.msra.mxu0 0.0
    %273 = vmatprep.mubr.f32.mxu0 0.0
    %274 = vmatmul.mubr.f32.gmra.mrb[0].mxu0 %v207
    %v275 = vpop.f32.mrb[0].mxu0
    %v276 = vadd.f32 0.0, %v275
    %v277 = vpop.f32.mrb[0].mxu0
    %278 = vdwg.mxu0
    %v279 = vadd.f32 %v154, %v276
    %v280 = vxor.u32 %v279, 2147483648
    %v281 = vmul.f32 %v280, 1.442695
    %v282 = vpow.pop %v281
    %v283 = vadd.f32 %v282, 1.0
    %v284 = vrcp.pop %v283
    %v285 = vmul.f32 1.0, %v284
    %v286 = vtanh.pop %v279
    %v287 = vmul.f32 %v285, 0.0
    %289 = vrot.lane.b32.xlu0 %v286, 64
    %v290 = vpop.permute.xlu0 %289
    %v292 = vmul.f32 %v285, %v290
    %294 = vrot.lane.b32.xlu0 %v292, 32
    %v295 = vpop.permute.xlu0 %294
    %v297 = vadd.f32 %v287, %v295
    %v298 = vtanh.pop %v297
    %300 = vrot.lane.b32.xlu0 %v298, 64
    %v301 = vpop.permute.xlu0 %300
    %v303 = vmul.f32 %v285, %v301
    %305 = vrot.lane.b32.xlu0 %v303, 32
    %v306 = vpop.permute.xlu0 %305
    %v308 = vsel %vm205, %v306, 0.0
    %v310 = vlaneseq
    %v311 = vshrl.u32 %v310, 7
    %v312 = vsub.s32 0, %v311
    %v313 = vrot.slane %v204, %v312
    %vm315 = vcmask 523264
    %v317 = vsel %vm315, %v308, 0
    %319 = vmatprep.subr.mxu0 0.0
    %320 = vmatpush1.msra.mxu0 %v196
    %321 = vmatprep.subr.mxu0 0.0
    %322 = vmatpush1.msra.mxu0 %v197
    %323 = vmatprep.subr.mxu0 0.0
    %324 = vmatpush1.msra.mxu0 %v198
    %325 = vmatprep.subr.mxu0 0.0
    %326 = vmatpush1.msra.mxu0 %v199
    %327 = vmatprep.subr.mxu0 0.0
    %328 = vmatpush1.msra.mxu0 %v200
    %329 = vmatprep.subr.mxu0 0.0
    %330 = vmatpush1.msra.mxu0 %v201
    %331 = vmatprep.subr.mxu0 0.0
    %332 = vmatpush1.msra.mxu0 %v202
    %333 = vmatprep.subr.mxu0 0.0
    %334 = vmatpush1.msra.mxu0 %v203
    %335 = vmatprep.subr.mxu0 0.0
    %336 = vmatpush1.msra.mxu0 0.0
    %337 = vmatprep.subr.mxu0 0.0
    %338 = vmatpush1.msra.mxu0 0.0
    %339 = vmatprep.subr.mxu0 0.0
    %340 = vmatpush1.msra.mxu0 0.0
    %341 = vmatprep.subr.mxu0 0.0
    %342 = vmatpush1.msra.mxu0 0.0
    %343 = vmatprep.subr.mxu0 0.0
    %344 = vmatpush1.msra.mxu0 0.0
    %345 = vmatprep.subr.mxu0 0.0
    %346 = vmatpush1.msra.mxu0 0.0
    %347 = vmatprep.subr.mxu0 0.0
    %348 = vmatpush1.msra.mxu0 0.0
    %349 = vmatprep.subr.mxu0 0.0
    %350 = vmatpush1.msra.mxu0 0.0
    %351 = vmatprep.subr.mxu0 0.0
    %352 = vmatpush1.msra.mxu0 0.0
    %353 = vmatprep.subr.mxu0 0.0
    %354 = vmatpush1.msra.mxu0 0.0
    %355 = vmatprep.subr.mxu0 0.0
    %356 = vmatpush1.msra.mxu0 0.0
    %357 = vmatprep.subr.mxu0 0.0
    %358 = vmatpush1.msra.mxu0 0.0
    %359 = vmatprep.subr.mxu0 0.0
    %360 = vmatpush1.msra.mxu0 0.0
    %361 = vmatprep.subr.mxu0 0.0
    %362 = vmatpush1.msra.mxu0 0.0
    %363 = vmatprep.subr.mxu0 0.0
    %364 = vmatpush1.msra.mxu0 0.0
    %365 = vmatprep.subr.mxu0 0.0
    %366 = vmatpush1.msra.mxu0 0.0
    %367 = vmatprep.subr.mxu0 0.0
    %368 = vmatpush1.msra.mxu0 0.0
    %369 = vmatprep.subr.mxu0 0.0
    %370 = vmatpush1.msra.mxu0 0.0
    %371 = vmatprep.subr.mxu0 0.0
    %372 = vmatpush1.msra.mxu0 0.0
    %373 = vmatprep.subr.mxu0 0.0
    %374 = vmatpush1.msra.mxu0 0.0
    %375 = vmatprep.subr.mxu0 0.0
    %376 = vmatpush1.msra.mxu0 0.0
    %377 = vmatprep.subr.mxu0 0.0
    %378 = vmatpush1.msra.mxu0 0.0
    %379 = vmatprep.subr.mxu0 0.0
    %380 = vmatpush1.msra.mxu0 0.0
    %381 = vmatprep.subr.mxu0 0.0
    %382 = vmatpush1.msra.mxu0 0.0
    %383 = vmatprep.mubr.f32.mxu0 0.0
    %384 = vmatmul.mubr.f32.gmra.mrb[0].mxu0 %v317
    %v385 = vpop.f32.mrb[0].mxu0
    %v386 = vadd.f32 %v313, %v385
    %v387 = vpop.f32.mrb[0].mxu0
    %388 = vdwg.mxu0
    %v389 = vxor.u32 %v386, 2147483648
    %v390 = vmul.f32 %v389, 1.442695
    %v391 = vpow.pop %v390
    %v392 = vadd.f32 %v391, 1.0
    %v393 = vrcp.pop %v392
    %v394 = vmul.f32 1.0, %v393
    %v395 = vtanh.pop %v386
    %v396 = vmul.f32 %v394, 0.0
    %398 = vrot.lane.b32.xlu0 %v395, 64
    %v399 = vpop.permute.xlu0 %398
    %v401 = vmul.f32 %v394, %v399
    %403 = vrot.lane.b32.xlu0 %v401, 32
    %v404 = vpop.permute.xlu0 %403
    %v406 = vadd.f32 %v396, %v404
    %v407 = vtanh.pop %v406
    %409 = vrot.lane.b32.xlu0 %v407, 64
    %v410 = vpop.permute.xlu0 %409
    %v412 = vmul.f32 %v394, %v410
    %v413 = vsel %vm205, %v306, 0
    %415 = vmatprep.subr.mxu0 0.0
    %416 = vmatpush1.msra.mxu0 %v192
    %417 = vmatprep.subr.mxu0 0.0
    %418 = vmatpush1.msra.mxu0 %v193
    %419 = vmatprep.subr.mxu0 0.0
    %420 = vmatpush1.msra.mxu0 %v194
    %421 = vmatprep.subr.mxu0 0.0
    %422 = vmatpush1.msra.mxu0 %v195
    %423 = vmatprep.subr.mxu0 0.0
    %424 = vmatpush1.msra.mxu0 0.0
    %425 = vmatprep.subr.mxu0 0.0
    %426 = vmatpush1.msra.mxu0 0.0
    %427 = vmatprep.subr.mxu0 0.0
    %428 = vmatpush1.msra.mxu0 0.0
    %429 = vmatprep.subr.mxu0 0.0
    %430 = vmatpush1.msra.mxu0 0.0
    %431 = vmatprep.subr.mxu0 0.0
    %432 = vmatpush1.msra.mxu0 0.0
    %433 = vmatprep.subr.mxu0 0.0
    %434 = vmatpush1.msra.mxu0 0.0
    %435 = vmatprep.subr.mxu0 0.0
    %436 = vmatpush1.msra.mxu0 0.0
    %437 = vmatprep.subr.mxu0 0.0
    %438 = vmatpush1.msra.mxu0 0.0
    %439 = vmatprep.subr.mxu0 0.0
    %440 = vmatpush1.msra.mxu0 0.0
    %441 = vmatprep.subr.mxu0 0.0
    %442 = vmatpush1.msra.mxu0 0.0
    %443 = vmatprep.subr.mxu0 0.0
    %444 = vmatpush1.msra.mxu0 0.0
    %445 = vmatprep.subr.mxu0 0.0
    %446 = vmatpush1.msra.mxu0 0.0
    %447 = vmatprep.subr.mxu0 0.0
    %448 = vmatpush1.msra.mxu0 0.0
    %449 = vmatprep.subr.mxu0 0.0
    %450 = vmatpush1.msra.mxu0 0.0
    %451 = vmatprep.subr.mxu0 0.0
    %452 = vmatpush1.msra.mxu0 0.0
    %453 = vmatprep.subr.mxu0 0.0
    %454 = vmatpush1.msra.mxu0 0.0
    %455 = vmatprep.subr.mxu0 0.0
    %456 = vmatpush1.msra.mxu0 0.0
    %457 = vmatprep.subr.mxu0 0.0
    %458 = vmatpush1.msra.mxu0 0.0
    %459 = vmatprep.subr.mxu0 0.0
    %460 = vmatpush1.msra.mxu0 0.0
    %461 = vmatprep.subr.mxu0 0.0
    %462 = vmatpush1.msra.mxu0 0.0
    %463 = vmatprep.subr.mxu0 0.0
    %464 = vmatpush1.msra.mxu0 0.0
    %465 = vmatprep.subr.mxu0 0.0
    %466 = vmatpush1.msra.mxu0 0.0
    %467 = vmatprep.subr.mxu0 0.0
    %468 = vmatpush1.msra.mxu0 0.0
    %469 = vmatprep.subr.mxu0 0.0
    %470 = vmatpush1.msra.mxu0 0.0
    %471 = vmatprep.subr.mxu0 0.0
    %472 = vmatpush1.msra.mxu0 0.0
    %473 = vmatprep.subr.mxu0 0.0
    %474 = vmatpush1.msra.mxu0 0.0
    %475 = vmatprep.subr.mxu0 0.0
    %476 = vmatpush1.msra.mxu0 0.0
    %477 = vmatprep.subr.mxu0 0.0
    %478 = vmatpush1.msra.mxu0 0.0
    %479 = vmatprep.mubr.f32.mxu0 0.0
    %480 = vmatmul.mubr.f32.gmra.mrb[0].mxu0 %v413
    %v481 = vpop.f32.mrb[0].mxu0
    %v482 = vadd.f32 0.0, %v481
    %v483 = vpop.f32.mrb[0].mxu0
    %484 = vdwg.mxu0
    %v485 = vadd.f32 %v159, %v482
    %v486 = vxor.u32 %v485, 2147483648
    %v487 = vmul.f32 %v486, 1.442695
    %v488 = vpow.pop %v487
    %v489 = vadd.f32 %v488, 1.0
    %v490 = vrcp.pop %v489
    %v491 = vmul.f32 1.0, %v490
    %v492 = vtanh.pop %v485
    %v493 = vmul.f32 %v491, %v297
    %495 = vrot.lane.b32.xlu0 %v492, 64
    %v496 = vpop.permute.xlu0 %495
    %v498 = vmul.f32 %v491, %v496
    %500 = vrot.lane.b32.xlu0 %v498, 32
    %v501 = vpop.permute.xlu0 %500
    %v503 = vadd.f32 %v493, %v501
    %v504 = vtanh.pop %v503
    %506 = vrot.lane.b32.xlu0 %v504, 64
    %v507 = vpop.permute.xlu0 %506
    %v509 = vmul.f32 %v491, %v507
    %511 = vrot.lane.b32.xlu0 %v509, 32
    %v512 = vpop.permute.xlu0 %511
    %515 = vrot.lane.b32.xlu0 %v412, 64
    %v516 = vpop.permute.xlu0 %515
    %v518 = vsel %vm205, %v512, %v516
    %v520 = vsel %vm315, %v518, 0
    %522 = vmatprep.subr.mxu0 0.0
    %523 = vmatpush1.msra.mxu0 %v196
    %524 = vmatprep.subr.mxu0 0.0
    %525 = vmatpush1.msra.mxu0 %v197
    %526 = vmatprep.subr.mxu0 0.0
    %527 = vmatpush1.msra.mxu0 %v198
    %528 = vmatprep.subr.mxu0 0.0
    %529 = vmatpush1.msra.mxu0 %v199
    %530 = vmatprep.subr.mxu0 0.0
    %531 = vmatpush1.msra.mxu0 %v200
    %532 = vmatprep.subr.mxu0 0.0
    %533 = vmatpush1.msra.mxu0 %v201
    %534 = vmatprep.subr.mxu0 0.0
    %535 = vmatpush1.msra.mxu0 %v202
    %536 = vmatprep.subr.mxu0 0.0
    %537 = vmatpush1.msra.mxu0 %v203
    %538 = vmatprep.subr.mxu0 0.0
    %539 = vmatpush1.msra.mxu0 0.0
    %540 = vmatprep.subr.mxu0 0.0
    %541 = vmatpush1.msra.mxu0 0.0
    %542 = vmatprep.subr.mxu0 0.0
    %543 = vmatpush1.msra.mxu0 0.0
    %544 = vmatprep.subr.mxu0 0.0
    %545 = vmatpush1.msra.mxu0 0.0
    %546 = vmatprep.subr.mxu0 0.0
    %547 = vmatpush1.msra.mxu0 0.0
    %548 = vmatprep.subr.mxu0 0.0
    %549 = vmatpush1.msra.mxu0 0.0
    %550 = vmatprep.subr.mxu0 0.0
    %551 = vmatpush1.msra.mxu0 0.0
    %552 = vmatprep.subr.mxu0 0.0
    %553 = vmatpush1.msra.mxu0 0.0
    %554 = vmatprep.subr.mxu0 0.0
    %555 = vmatpush1.msra.mxu0 0.0
    %556 = vmatprep.subr.mxu0 0.0
    %557 = vmatpush1.msra.mxu0 0.0
    %558 = vmatprep.subr.mxu0 0.0
    %559 = vmatpush1.msra.mxu0 0.0
    %560 = vmatprep.subr.mxu0 0.0
    %561 = vmatpush1.msra.mxu0 0.0
    %562 = vmatprep.subr.mxu0 0.0
    %563 = vmatpush1.msra.mxu0 0.0
    %564 = vmatprep.subr.mxu0 0.0
    %565 = vmatpush1.msra.mxu0 0.0
    %566 = vmatprep.subr.mxu0 0.0
    %567 = vmatpush1.msra.mxu0 0.0
    %568 = vmatprep.subr.mxu0 0.0
    %569 = vmatpush1.msra.mxu0 0.0
    %570 = vmatprep.subr.mxu0 0.0
    %571 = vmatpush1.msra.mxu0 0.0
    %572 = vmatprep.subr.mxu0 0.0
    %573 = vmatpush1.msra.mxu0 0.0
    %574 = vmatprep.subr.mxu0 0.0
    %575 = vmatpush1.msra.mxu0 0.0
    %576 = vmatprep.subr.mxu0 0.0
    %577 = vmatpush1.msra.mxu0 0.0
    %578 = vmatprep.subr.mxu0 0.0
    %579 = vmatpush1.msra.mxu0 0.0
    %580 = vmatprep.subr.mxu0 0.0
    %581 = vmatpush1.msra.mxu0 0.0
    %582 = vmatprep.subr.mxu0 0.0
    %583 = vmatpush1.msra.mxu0 0.0
    %584 = vmatprep.subr.mxu0 0.0
    %585 = vmatpush1.msra.mxu0 0.0
    %586 = vmatprep.mubr.f32.mxu0 0.0
    %587 = vmatmul.mubr.f32.gmra.mrb[0].mxu0 %v520
    %v588 = vpop.f32.mrb[0].mxu0
    %v589 = vadd.f32 %v313, %v588
    %v590 = vpop.f32.mrb[0].mxu0
    %591 = vdwg.mxu0
    %v592 = vxor.u32 %v589, 2147483648
    %v593 = vmul.f32 %v592, 1.442695
    %v594 = vpow.pop %v593
    %v595 = vadd.f32 %v594, 1.0
    %v596 = vrcp.pop %v595
    %v597 = vmul.f32 1.0, %v596
    %v598 = vtanh.pop %v589
    %v599 = vmul.f32 %v597, %v406
    %601 = vrot.lane.b32.xlu0 %v598, 64
    %v602 = vpop.permute.xlu0 %601
    %v604 = vmul.f32 %v597, %v602
    %606 = vrot.lane.b32.xlu0 %v604, 32
    %v607 = vpop.permute.xlu0 %606
    %v609 = vadd.f32 %v599, %v607
    %v610 = vtanh.pop %v609
    %612 = vrot.lane.b32.xlu0 %v610, 64
    %v613 = vpop.permute.xlu0 %612
    %v615 = vmul.f32 %v597, %v613
    %v616 = vsel %vm205, %v512, 0
    %618 = vmatprep.subr.mxu0 0.0
    %619 = vmatpush1.msra.mxu0 %v192
    %620 = vmatprep.subr.mxu0 0.0
    %621 = vmatpush1.msra.mxu0 %v193
    %622 = vmatprep.subr.mxu0 0.0
    %623 = vmatpush1.msra.mxu0 %v194
    %624 = vmatprep.subr.mxu0 0.0
    %625 = vmatpush1.msra.mxu0 %v195
    %626 = vmatprep.subr.mxu0 0.0
    %627 = vmatpush1.msra.mxu0 0.0
    %628 = vmatprep.subr.mxu0 0.0
    %629 = vmatpush1.msra.mxu0 0.0
    %630 = vmatprep.subr.mxu0 0.0
    %631 = vmatpush1.msra.mxu0 0.0
    %632 = vmatprep.subr.mxu0 0.0
    %633 = vmatpush1.msra.mxu0 0.0
    %634 = vmatprep.subr.mxu0 0.0
    %635 = vmatpush1.msra.mxu0 0.0
    %636 = vmatprep.subr.mxu0 0.0
    %637 = vmatpush1.msra.mxu0 0.0
    %638 = vmatprep.subr.mxu0 0.0
    %639 = vmatpush1.msra.mxu0 0.0
    %640 = vmatprep.subr.mxu0 0.0
    %641 = vmatpush1.msra.mxu0 0.0
    %642 = vmatprep.subr.mxu0 0.0
    %643 = vmatpush1.msra.mxu0 0.0
    %644 = vmatprep.subr.mxu0 0.0
    %645 = vmatpush1.msra.mxu0 0.0
    %646 = vmatprep.subr.mxu0 0.0
    %647 = vmatpush1.msra.mxu0 0.0
    %648 = vmatprep.subr.mxu0 0.0
    %649 = vmatpush1.msra.mxu0 0.0
    %650 = vmatprep.subr.mxu0 0.0
    %651 = vmatpush1.msra.mxu0 0.0
    %652 = vmatprep.subr.mxu0 0.0
    %653 = vmatpush1.msra.mxu0 0.0
    %654 = vmatprep.subr.mxu0 0.0
    %655 = vmatpush1.msra.mxu0 0.0
    %656 = vmatprep.subr.mxu0 0.0
    %657 = vmatpush1.msra.mxu0 0.0
    %658 = vmatprep.subr.mxu0 0.0
    %659 = vmatpush1.msra.mxu0 0.0
    %660 = vmatprep.subr.mxu0 0.0
    %661 = vmatpush1.msra.mxu0 0.0
    %662 = vmatprep.subr.mxu0 0.0
    %663 = vmatpush1.msra.mxu0 0.0
    %664 = vmatprep.subr.mxu0 0.0
    %665 = vmatpush1.msra.mxu0 0.0
    %666 = vmatprep.subr.mxu0 0.0
    %667 = vmatpush1.msra.mxu0 0.0
    %668 = vmatprep.subr.mxu0 0.0
    %669 = vmatpush1.msra.mxu0 0.0
    %670 = vmatprep.subr.mxu0 0.0
    %671 = vmatpush1.msra.mxu0 0.0
    %672 = vmatprep.subr.mxu0 0.0
    %673 = vmatpush1.msra.mxu0 0.0
    %674 = vmatprep.subr.mxu0 0.0
    %675 = vmatpush1.msra.mxu0 0.0
    %676 = vmatprep.subr.mxu0 0.0
    %677 = vmatpush1.msra.mxu0 0.0
    %678 = vmatprep.subr.mxu0 0.0
    %679 = vmatpush1.msra.mxu0 0.0
    %680 = vmatprep.subr.mxu0 0.0
    %681 = vmatpush1.msra.mxu0 0.0
    %682 = vmatprep.mubr.f32.mxu0 0.0
    %683 = vmatmul.mubr.f32.gmra.mrb[0].mxu0 %v616
    %v684 = vpop.f32.mrb[0].mxu0
    %v685 = vadd.f32 0.0, %v684
    %v686 = vpop.f32.mrb[0].mxu0
    %687 = vdwg.mxu0
    %v688 = vadd.f32 %v164, %v685
    %v689 = vxor.u32 %v688, 2147483648
    %v690 = vmul.f32 %v689, 1.442695
    %v691 = vpow.pop %v690
    %v692 = vadd.f32 %v691, 1.0
    %v693 = vrcp.pop %v692
    %v694 = vmul.f32 1.0, %v693
    %v695 = vtanh.pop %v688
    %v696 = vmul.f32 %v694, %v503
    %698 = vrot.lane.b32.xlu0 %v695, 64
    %v699 = vpop.permute.xlu0 %698
    %v701 = vmul.f32 %v694, %v699
    %703 = vrot.lane.b32.xlu0 %v701, 32
    %v704 = vpop.permute.xlu0 %703
    %v706 = vadd.f32 %v696, %v704
    %v707 = vtanh.pop %v706
    %709 = vrot.lane.b32.xlu0 %v707, 64
    %v710 = vpop.permute.xlu0 %709
    %v712 = vmul.f32 %v694, %v710
    %714 = vrot.lane.b32.xlu0 %v712, 32
    %v715 = vpop.permute.xlu0 %714
    %718 = vrot.lane.b32.xlu0 %v615, 64
    %v719 = vpop.permute.xlu0 %718
    %v721 = vsel %vm205, %v715, %v719
    %v723 = vsel %vm315, %v721, 0
    %725 = vmatprep.subr.mxu0 0.0
    %726 = vmatpush1.msra.mxu0 %v196
    %727 = vmatprep.subr.mxu0 0.0
    %728 = vmatpush1.msra.mxu0 %v197
    %729 = vmatprep.subr.mxu0 0.0
    %730 = vmatpush1.msra.mxu0 %v198
    %731 = vmatprep.subr.mxu0 0.0
    %732 = vmatpush1.msra.mxu0 %v199
    %733 = vmatprep.subr.mxu0 0.0
    %734 = vmatpush1.msra.mxu0 %v200
    %735 = vmatprep.subr.mxu0 0.0
    %736 = vmatpush1.msra.mxu0 %v201
    %737 = vmatprep.subr.mxu0 0.0
    %738 = vmatpush1.msra.mxu0 %v202
    %739 = vmatprep.subr.mxu0 0.0
    %740 = vmatpush1.msra.mxu0 %v203
    %741 = vmatprep.subr.mxu0 0.0
    %742 = vmatpush1.msra.mxu0 0.0
    %743 = vmatprep.subr.mxu0 0.0
    %744 = vmatpush1.msra.mxu0 0.0
    %745 = vmatprep.subr.mxu0 0.0
    %746 = vmatpush1.msra.mxu0 0.0
    %747 = vmatprep.subr.mxu0 0.0
    %748 = vmatpush1.msra.mxu0 0.0
    %749 = vmatprep.subr.mxu0 0.0
    %750 = vmatpush1.msra.mxu0 0.0
    %751 = vmatprep.subr.mxu0 0.0
    %752 = vmatpush1.msra.mxu0 0.0
    %753 = vmatprep.subr.mxu0 0.0
    %754 = vmatpush1.msra.mxu0 0.0
    %755 = vmatprep.subr.mxu0 0.0
    %756 = vmatpush1.msra.mxu0 0.0
    %757 = vmatprep.subr.mxu0 0.0
    %758 = vmatpush1.msra.mxu0 0.0
    %759 = vmatprep.subr.mxu0 0.0
    %760 = vmatpush1.msra.mxu0 0.0
    %761 = vmatprep.subr.mxu0 0.0
    %762 = vmatpush1.msra.mxu0 0.0
    %763 = vmatprep.subr.mxu0 0.0
    %764 = vmatpush1.msra.mxu0 0.0
    %765 = vmatprep.subr.mxu0 0.0
    %766 = vmatpush1.msra.mxu0 0.0
    %767 = vmatprep.subr.mxu0 0.0
    %768 = vmatpush1.msra.mxu0 0.0
    %769 = vmatprep.subr.mxu0 0.0
    %770 = vmatpush1.msra.mxu0 0.0
    %771 = vmatprep.subr.mxu0 0.0
    %772 = vmatpush1.msra.mxu0 0.0
    %773 = vmatprep.subr.mxu0 0.0
    %774 = vmatpush1.msra.mxu0 0.0
    %775 = vmatprep.subr.mxu0 0.0
    %776 = vmatpush1.msra.mxu0 0.0
    %777 = vmatprep.subr.mxu0 0.0
    %778 = vmatpush1.msra.mxu0 0.0
    %779 = vmatprep.subr.mxu0 0.0
    %780 = vmatpush1.msra.mxu0 0.0
    %781 = vmatprep.subr.mxu0 0.0
    %782 = vmatpush1.msra.mxu0 0.0
    %783 = vmatprep.subr.mxu0 0.0
    %784 = vmatpush1.msra.mxu0 0.0
    %785 = vmatprep.subr.mxu0 0.0
    %786 = vmatpush1.msra.mxu0 0.0
    %787 = vmatprep.subr.mxu0 0.0
    %788 = vmatpush1.msra.mxu0 0.0
    %789 = vmatprep.mubr.f32.mxu0 0.0
    %790 = vmatmul.mubr.f32.gmra.mrb[0].mxu0 %v723
    %v791 = vpop.f32.mrb[0].mxu0
    %v792 = vadd.f32 %v313, %v791
    %v793 = vpop.f32.mrb[0].mxu0
    %794 = vdwg.mxu0
    %v795 = vxor.u32 %v792, 2147483648
    %v796 = vmul.f32 %v795, 1.442695
    %v797 = vpow.pop %v796
    %v798 = vadd.f32 %v797, 1.0
    %v799 = vrcp.pop %v798
    %v800 = vmul.f32 1.0, %v799
    %v801 = vtanh.pop %v792
    %v802 = vmul.f32 %v800, %v609
    %804 = vrot.lane.b32.xlu0 %v801, 64
    %v805 = vpop.permute.xlu0 %804
    %v807 = vmul.f32 %v800, %v805
    %809 = vrot.lane.b32.xlu0 %v807, 32
    %v810 = vpop.permute.xlu0 %809
    %v812 = vadd.f32 %v802, %v810
    %v813 = vtanh.pop %v812
    %815 = vrot.lane.b32.xlu0 %v813, 64
    %v816 = vpop.permute.xlu0 %815
    %v818 = vmul.f32 %v800, %v816
    %v819 = vsel %vm205, %v715, 0
    %821 = vmatprep.subr.mxu0 0.0
    %822 = vmatpush1.msra.mxu0 %v192
    %823 = vmatprep.subr.mxu0 0.0
    %824 = vmatpush1.msra.mxu0 %v193
    %825 = vmatprep.subr.mxu0 0.0
    %826 = vmatpush1.msra.mxu0 %v194
    %827 = vmatprep.subr.mxu0 0.0
    %828 = vmatpush1.msra.mxu0 %v195
    %829 = vmatprep.subr.mxu0 0.0
    %830 = vmatpush1.msra.mxu0 0.0
    %831 = vmatprep.subr.mxu0 0.0
    %832 = vmatpush1.msra.mxu0 0.0
    %833 = vmatprep.subr.mxu0 0.0
    %834 = vmatpush1.msra.mxu0 0.0
    %835 = vmatprep.subr.mxu0 0.0
    %836 = vmatpush1.msra.mxu0 0.0
    %837 = vmatprep.subr.mxu0 0.0
    %838 = vmatpush1.msra.mxu0 0.0
    %839 = vmatprep.subr.mxu0 0.0
    %840 = vmatpush1.msra.mxu0 0.0
    %841 = vmatprep.subr.mxu0 0.0
    %842 = vmatpush1.msra.mxu0 0.0
    %843 = vmatprep.subr.mxu0 0.0
    %844 = vmatpush1.msra.mxu0 0.0
    %845 = vmatprep.subr.mxu0 0.0
    %846 = vmatpush1.msra.mxu0 0.0
    %847 = vmatprep.subr.mxu0 0.0
    %848 = vmatpush1.msra.mxu0 0.0
    %849 = vmatprep.subr.mxu0 0.0
    %850 = vmatpush1.msra.mxu0 0.0
    %851 = vmatprep.subr.mxu0 0.0
    %852 = vmatpush1.msra.mxu0 0.0
    %853 = vmatprep.subr.mxu0 0.0
    %854 = vmatpush1.msra.mxu0 0.0
    %855 = vmatprep.subr.mxu0 0.0
    %856 = vmatpush1.msra.mxu0 0.0
    %857 = vmatprep.subr.mxu0 0.0
    %858 = vmatpush1.msra.mxu0 0.0
    %859 = vmatprep.subr.mxu0 0.0
    %860 = vmatpush1.msra.mxu0 0.0
    %861 = vmatprep.subr.mxu0 0.0
    %862 = vmatpush1.msra.mxu0 0.0
    %863 = vmatprep.subr.mxu0 0.0
    %864 = vmatpush1.msra.mxu0 0.0
    %865 = vmatprep.subr.mxu0 0.0
    %866 = vmatpush1.msra.mxu0 0.0
    %867 = vmatprep.subr.mxu0 0.0
    %868 = vmatpush1.msra.mxu0 0.0
    %869 = vmatprep.subr.mxu0 0.0
    %870 = vmatpush1.msra.mxu0 0.0
    %871 = vmatprep.subr.mxu0 0.0
    %872 = vmatpush1.msra.mxu0 0.0
    %873 = vmatprep.subr.mxu0 0.0
    %874 = vmatpush1.msra.mxu0 0.0
    %875 = vmatprep.subr.mxu0 0.0
    %876 = vmatpush1.msra.mxu0 0.0
    %877 = vmatprep.subr.mxu0 0.0
    %878 = vmatpush1.msra.mxu0 0.0
    %879 = vmatprep.subr.mxu0 0.0
    %880 = vmatpush1.msra.mxu0 0.0
    %881 = vmatprep.subr.mxu0 0.0
    %882 = vmatpush1.msra.mxu0 0.0
    %883 = vmatprep.subr.mxu0 0.0
    %884 = vmatpush1.msra.mxu0 0.0
    %885 = vmatprep.mubr.f32.mxu0 0.0
    %886 = vmatmul.mubr.f32.gmra.mrb[0].mxu0 %v819
    %v887 = vpop.f32.mrb[0].mxu0
    %v888 = vadd.f32 0.0, %v887
    %v889 = vpop.f32.mrb[0].mxu0
    %890 = vdwg.mxu0
    %v891 = vadd.f32 %v169, %v888
    %v892 = vxor.u32 %v891, 2147483648
    %v893 = vmul.f32 %v892, 1.442695
    %v894 = vpow.pop %v893
    %v895 = vadd.f32 %v894, 1.0
    %v896 = vrcp.pop %v895
    %v897 = vmul.f32 1.0, %v896
    %v898 = vtanh.pop %v891
    %v899 = vmul.f32 %v897, %v706
    %901 = vrot.lane.b32.xlu0 %v898, 64
    %v902 = vpop.permute.xlu0 %901
    %v904 = vmul.f32 %v897, %v902
    %906 = vrot.lane.b32.xlu0 %v904, 32
    %v907 = vpop.permute.xlu0 %906
    %v909 = vadd.f32 %v899, %v907
    %v910 = vtanh.pop %v909
    %912 = vrot.lane.b32.xlu0 %v910, 64
    %v913 = vpop.permute.xlu0 %912
    %v915 = vmul.f32 %v897, %v913
    %917 = vrot.lane.b32.xlu0 %v915, 32
    %v918 = vpop.permute.xlu0 %917
    %921 = vrot.lane.b32.xlu0 %v818, 64
    %v922 = vpop.permute.xlu0 %921
    %v924 = vsel %vm205, %v918, %v922
    %v926 = vsel %vm315, %v924, 0
    %928 = vmatprep.subr.mxu0 0.0
    %929 = vmatpush1.msra.mxu0 %v196
    %930 = vmatprep.subr.mxu0 0.0
    %931 = vmatpush1.msra.mxu0 %v197
    %932 = vmatprep.subr.mxu0 0.0
    %933 = vmatpush1.msra.mxu0 %v198
    %934 = vmatprep.subr.mxu0 0.0
    %935 = vmatpush1.msra.mxu0 %v199
    %936 = vmatprep.subr.mxu0 0.0
    %937 = vmatpush1.msra.mxu0 %v200
    %938 = vmatprep.subr.mxu0 0.0
    %939 = vmatpush1.msra.mxu0 %v201
    %940 = vmatprep.subr.mxu0 0.0
    %941 = vmatpush1.msra.mxu0 %v202
    %942 = vmatprep.subr.mxu0 0.0
    %943 = vmatpush1.msra.mxu0 %v203
    %944 = vmatprep.subr.mxu0 0.0
    %945 = vmatpush1.msra.mxu0 0.0
    %946 = vmatprep.subr.mxu0 0.0
    %947 = vmatpush1.msra.mxu0 0.0
    %948 = vmatprep.subr.mxu0 0.0
    %949 = vmatpush1.msra.mxu0 0.0
    %950 = vmatprep.subr.mxu0 0.0
    %951 = vmatpush1.msra.mxu0 0.0
    %952 = vmatprep.subr.mxu0 0.0
    %953 = vmatpush1.msra.mxu0 0.0
    %954 = vmatprep.subr.mxu0 0.0
    %955 = vmatpush1.msra.mxu0 0.0
    %956 = vmatprep.subr.mxu0 0.0
    %957 = vmatpush1.msra.mxu0 0.0
    %958 = vmatprep.subr.mxu0 0.0
    %959 = vmatpush1.msra.mxu0 0.0
    %960 = vmatprep.subr.mxu0 0.0
    %961 = vmatpush1.msra.mxu0 0.0
    %962 = vmatprep.subr.mxu0 0.0
    %963 = vmatpush1.msra.mxu0 0.0
    %964 = vmatprep.subr.mxu0 0.0
    %965 = vmatpush1.msra.mxu0 0.0
    %966 = vmatprep.subr.mxu0 0.0
    %967 = vmatpush1.msra.mxu0 0.0
    %968 = vmatprep.subr.mxu0 0.0
    %969 = vmatpush1.msra.mxu0 0.0
    %970 = vmatprep.subr.mxu0 0.0
    %971 = vmatpush1.msra.mxu0 0.0
    %972 = vmatprep.subr.mxu0 0.0
    %973 = vmatpush1.msra.mxu0 0.0
    %974 = vmatprep.subr.mxu0 0.0
    %975 = vmatpush1.msra.mxu0 0.0
    %976 = vmatprep.subr.mxu0 0.0
    %977 = vmatpush1.msra.mxu0 0.0
    %978 = vmatprep.subr.mxu0 0.0
    %979 = vmatpush1.msra.mxu0 0.0
    %980 = vmatprep.subr.mxu0 0.0
    %981 = vmatpush1.msra.mxu0 0.0
    %982 = vmatprep.subr.mxu0 0.0
    %983 = vmatpush1.msra.mxu0 0.0
    %984 = vmatprep.subr.mxu0 0.0
    %985 = vmatpush1.msra.mxu0 0.0
    %986 = vmatprep.subr.mxu0 0.0
    %987 = vmatpush1.msra.mxu0 0.0
    %988 = vmatprep.subr.mxu0 0.0
    %989 = vmatpush1.msra.mxu0 0.0
    %990 = vmatprep.subr.mxu0 0.0
    %991 = vmatpush1.msra.mxu0 0.0
    %992 = vmatprep.mubr.f32.mxu0 0.0
    %993 = vmatmul.mubr.f32.gmra.mrb[0].mxu0 %v926
    %v994 = vpop.f32.mrb[0].mxu0
    %v995 = vadd.f32 %v313, %v994
    %v996 = vpop.f32.mrb[0].mxu0
    %997 = vdwg.mxu0
    %v998 = vxor.u32 %v995, 2147483648
    %v999 = vmul.f32 %v998, 1.442695
    %v1000 = vpow.pop %v999
    %v1001 = vadd.f32 %v1000, 1.0
    %v1002 = vrcp.pop %v1001
    %v1003 = vmul.f32 1.0, %v1002
    %v1004 = vtanh.pop %v995
    %v1005 = vmul.f32 %v1003, %v812
    %1007 = vrot.lane.b32.xlu0 %v1004, 64
    %v1008 = vpop.permute.xlu0 %1007
    %v1010 = vmul.f32 %v1003, %v1008
    %1012 = vrot.lane.b32.xlu0 %v1010, 32
    %v1013 = vpop.permute.xlu0 %1012
    %v1015 = vadd.f32 %v1005, %v1013
    %v1016 = vtanh.pop %v1015
    %1018 = vrot.lane.b32.xlu0 %v1016, 64
    %v1019 = vpop.permute.xlu0 %1018
    %v1021 = vmul.f32 %v1003, %v1019
    %v1022 = vsel %vm205, %v918, 0
    %1024 = vmatprep.subr.mxu0 0.0
    %1025 = vmatpush1.msra.mxu0 %v192
    %1026 = vmatprep.subr.mxu0 0.0
    %1027 = vmatpush1.msra.mxu0 %v193
    %1028 = vmatprep.subr.mxu0 0.0
    %1029 = vmatpush1.msra.mxu0 %v194
    %1030 = vmatprep.subr.mxu0 0.0
    %1031 = vmatpush1.msra.mxu0 %v195
    %1032 = vmatprep.subr.mxu0 0.0
    %1033 = vmatpush1.msra.mxu0 0.0
    %1034 = vmatprep.subr.mxu0 0.0
    %1035 = vmatpush1.msra.mxu0 0.0
    %1036 = vmatprep.subr.mxu0 0.0
    %1037 = vmatpush1.msra.mxu0 0.0
    %1038 = vmatprep.subr.mxu0 0.0
    %1039 = vmatpush1.msra.mxu0 0.0
    %1040 = vmatprep.subr.mxu0 0.0
    %1041 = vmatpush1.msra.mxu0 0.0
    %1042 = vmatprep.subr.mxu0 0.0
    %1043 = vmatpush1.msra.mxu0 0.0
    %1044 = vmatprep.subr.mxu0 0.0
    %1045 = vmatpush1.msra.mxu0 0.0
    %1046 = vmatprep.subr.mxu0 0.0
    %1047 = vmatpush1.msra.mxu0 0.0
    %1048 = vmatprep.subr.mxu0 0.0
    %1049 = vmatpush1.msra.mxu0 0.0
    %1050 = vmatprep.subr.mxu0 0.0
    %1051 = vmatpush1.msra.mxu0 0.0
    %1052 = vmatprep.subr.mxu0 0.0
    %1053 = vmatpush1.msra.mxu0 0.0
    %1054 = vmatprep.subr.mxu0 0.0
    %1055 = vmatpush1.msra.mxu0 0.0
    %1056 = vmatprep.subr.mxu0 0.0
    %1057 = vmatpush1.msra.mxu0 0.0
    %1058 = vmatprep.subr.mxu0 0.0
    %1059 = vmatpush1.msra.mxu0 0.0
    %1060 = vmatprep.subr.mxu0 0.0
    %1061 = vmatpush1.msra.mxu0 0.0
    %1062 = vmatprep.subr.mxu0 0.0
    %1063 = vmatpush1.msra.mxu0 0.0
    %1064 = vmatprep.subr.mxu0 0.0
    %1065 = vmatpush1.msra.mxu0 0.0
    %1066 = vmatprep.subr.mxu0 0.0
    %1067 = vmatpush1.msra.mxu0 0.0
    %1068 = vmatprep.subr.mxu0 0.0
    %1069 = vmatpush1.msra.mxu0 0.0
    %1070 = vmatprep.subr.mxu0 0.0
    %1071 = vmatpush1.msra.mxu0 0.0
    %1072 = vmatprep.subr.mxu0 0.0
    %1073 = vmatpush1.msra.mxu0 0.0
    %1074 = vmatprep.subr.mxu0 0.0
    %1075 = vmatpush1.msra.mxu0 0.0
    %1076 = vmatprep.subr.mxu0 0.0
    %1077 = vmatpush1.msra.mxu0 0.0
    %1078 = vmatprep.subr.mxu0 0.0
    %1079 = vmatpush1.msra.mxu0 0.0
    %1080 = vmatprep.subr.mxu0 0.0
    %1081 = vmatpush1.msra.mxu0 0.0
    %1082 = vmatprep.subr.mxu0 0.0
    %1083 = vmatpush1.msra.mxu0 0.0
    %1084 = vmatprep.subr.mxu0 0.0
    %1085 = vmatpush1.msra.mxu0 0.0
    %1086 = vmatprep.subr.mxu0 0.0
    %1087 = vmatpush1.msra.mxu0 0.0
    %1088 = vmatprep.mubr.f32.mxu0 0.0
    %1089 = vmatmul.mubr.f32.gmra.mrb[0].mxu0 %v1022
    %v1090 = vpop.f32.mrb[0].mxu0
    %v1091 = vadd.f32 0.0, %v1090
    %v1092 = vpop.f32.mrb[0].mxu0
    %1093 = vdwg.mxu0
    %v1094 = vadd.f32 %v174, %v1091
    %v1095 = vxor.u32 %v1094, 2147483648
    %v1096 = vmul.f32 %v1095, 1.442695
    %v1097 = vpow.pop %v1096
    %v1098 = vadd.f32 %v1097, 1.0
    %v1099 = vrcp.pop %v1098
    %v1100 = vmul.f32 1.0, %v1099
    %v1101 = vtanh.pop %v1094
    %v1102 = vmul.f32 %v1100, %v909
    %1104 = vrot.lane.b32.xlu0 %v1101, 64
    %v1105 = vpop.permute.xlu0 %1104
    %v1107 = vmul.f32 %v1100, %v1105
    %1109 = vrot.lane.b32.xlu0 %v1107, 32
    %v1110 = vpop.permute.xlu0 %1109
    %v1112 = vadd.f32 %v1102, %v1110
    %v1113 = vtanh.pop %v1112
    %1115 = vrot.lane.b32.xlu0 %v1113, 64
    %v1116 = vpop.permute.xlu0 %1115
    %v1118 = vmul.f32 %v1100, %v1116
    %1120 = vrot.lane.b32.xlu0 %v1118, 32
    %v1121 = vpop.permute.xlu0 %1120
    %1124 = vrot.lane.b32.xlu0 %v1021, 64
    %v1125 = vpop.permute.xlu0 %1124
    %v1127 = vsel %vm205, %v1121, %v1125
    %v1129 = vsel %vm315, %v1127, 0
    %1131 = vmatprep.subr.mxu0 0.0
    %1132 = vmatpush1.msra.mxu0 %v196
    %1133 = vmatprep.subr.mxu0 0.0
    %1134 = vmatpush1.msra.mxu0 %v197
    %1135 = vmatprep.subr.mxu0 0.0
    %1136 = vmatpush1.msra.mxu0 %v198
    %1137 = vmatprep.subr.mxu0 0.0
    %1138 = vmatpush1.msra.mxu0 %v199
    %1139 = vmatprep.subr.mxu0 0.0
    %1140 = vmatpush1.msra.mxu0 %v200
    %1141 = vmatprep.subr.mxu0 0.0
    %1142 = vmatpush1.msra.mxu0 %v201
    %1143 = vmatprep.subr.mxu0 0.0
    %1144 = vmatpush1.msra.mxu0 %v202
    %1145 = vmatprep.subr.mxu0 0.0
    %1146 = vmatpush1.msra.mxu0 %v203
    %1147 = vmatprep.subr.mxu0 0.0
    %1148 = vmatpush1.msra.mxu0 0.0
    %1149 = vmatprep.subr.mxu0 0.0
    %1150 = vmatpush1.msra.mxu0 0.0
    %1151 = vmatprep.subr.mxu0 0.0
    %1152 = vmatpush1.msra.mxu0 0.0
    %1153 = vmatprep.subr.mxu0 0.0
    %1154 = vmatpush1.msra.mxu0 0.0
    %1155 = vmatprep.subr.mxu0 0.0
    %1156 = vmatpush1.msra.mxu0 0.0
    %1157 = vmatprep.subr.mxu0 0.0
    %1158 = vmatpush1.msra.mxu0 0.0
    %1159 = vmatprep.subr.mxu0 0.0
    %1160 = vmatpush1.msra.mxu0 0.0
    %1161 = vmatprep.subr.mxu0 0.0
    %1162 = vmatpush1.msra.mxu0 0.0
    %1163 = vmatprep.subr.mxu0 0.0
    %1164 = vmatpush1.msra.mxu0 0.0
    %1165 = vmatprep.subr.mxu0 0.0
    %1166 = vmatpush1.msra.mxu0 0.0
    %1167 = vmatprep.subr.mxu0 0.0
    %1168 = vmatpush1.msra.mxu0 0.0
    %1169 = vmatprep.subr.mxu0 0.0
    %1170 = vmatpush1.msra.mxu0 0.0
    %1171 = vmatprep.subr.mxu0 0.0
    %1172 = vmatpush1.msra.mxu0 0.0
    %1173 = vmatprep.subr.mxu0 0.0
    %1174 = vmatpush1.msra.mxu0 0.0
    %1175 = vmatprep.subr.mxu0 0.0
    %1176 = vmatpush1.msra.mxu0 0.0
    %1177 = vmatprep.subr.mxu0 0.0
    %1178 = vmatpush1.msra.mxu0 0.0
    %1179 = vmatprep.subr.mxu0 0.0
    %1180 = vmatpush1.msra.mxu0 0.0
    %1181 = vmatprep.subr.mxu0 0.0
    %1182 = vmatpush1.msra.mxu0 0.0
    %1183 = vmatprep.subr.mxu0 0.0
    %1184 = vmatpush1.msra.mxu0 0.0
    %1185 = vmatprep.subr.mxu0 0.0
    %1186 = vmatpush1.msra.mxu0 0.0
    %1187 = vmatprep.subr.mxu0 0.0
    %1188 = vmatpush1.msra.mxu0 0.0
    %1189 = vmatprep.subr.mxu0 0.0
    %1190 = vmatpush1.msra.mxu0 0.0
    %1191 = vmatprep.subr.mxu0 0.0
    %1192 = vmatpush1.msra.mxu0 0.0
    %1193 = vmatprep.subr.mxu0 0.0
    %1194 = vmatpush1.msra.mxu0 0.0
    %1195 = vmatprep.mubr.f32.mxu0 0.0
    %1196 = vmatmul.mubr.f32.gmra.mrb[0].mxu0 %v1129
    %v1197 = vpop.f32.mrb[0].mxu0
    %v1198 = vadd.f32 %v313, %v1197
    %v1199 = vpop.f32.mrb[0].mxu0
    %1200 = vdwg.mxu0
    %v1201 = vxor.u32 %v1198, 2147483648
    %v1202 = vmul.f32 %v1201, 1.442695
    %v1203 = vpow.pop %v1202
    %v1204 = vadd.f32 %v1203, 1.0
    %v1205 = vrcp.pop %v1204
    %v1206 = vmul.f32 1.0, %v1205
    %v1207 = vtanh.pop %v1198
    %v1208 = vmul.f32 %v1206, %v1015
    %1210 = vrot.lane.b32.xlu0 %v1207, 64
    %v1211 = vpop.permute.xlu0 %1210
    %v1213 = vmul.f32 %v1206, %v1211
    %1215 = vrot.lane.b32.xlu0 %v1213, 32
    %v1216 = vpop.permute.xlu0 %1215
    %v1218 = vadd.f32 %v1208, %v1216
    %v1219 = vtanh.pop %v1218
    %1221 = vrot.lane.b32.xlu0 %v1219, 64
    %v1222 = vpop.permute.xlu0 %1221
    %v1224 = vmul.f32 %v1206, %v1222
    %v1225 = vsel %vm205, %v1121, 0
    %1227 = vmatprep.subr.mxu0 0.0
    %1228 = vmatpush1.msra.mxu0 %v192
    %1229 = vmatprep.subr.mxu0 0.0
    %1230 = vmatpush1.msra.mxu0 %v193
    %1231 = vmatprep.subr.mxu0 0.0
    %1232 = vmatpush1.msra.mxu0 %v194
    %1233 = vmatprep.subr.mxu0 0.0
    %1234 = vmatpush1.msra.mxu0 %v195
    %1235 = vmatprep.subr.mxu0 0.0
    %1236 = vmatpush1.msra.mxu0 0.0
    %1237 = vmatprep.subr.mxu0 0.0
    %1238 = vmatpush1.msra.mxu0 0.0
    %1239 = vmatprep.subr.mxu0 0.0
    %1240 = vmatpush1.msra.mxu0 0.0
    %1241 = vmatprep.subr.mxu0 0.0
    %1242 = vmatpush1.msra.mxu0 0.0
    %1243 = vmatprep.subr.mxu0 0.0
    %1244 = vmatpush1.msra.mxu0 0.0
    %1245 = vmatprep.subr.mxu0 0.0
    %1246 = vmatpush1.msra.mxu0 0.0
    %1247 = vmatprep.subr.mxu0 0.0
    %1248 = vmatpush1.msra.mxu0 0.0
    %1249 = vmatprep.subr.mxu0 0.0
    %1250 = vmatpush1.msra.mxu0 0.0
    %1251 = vmatprep.subr.mxu0 0.0
    %1252 = vmatpush1.msra.mxu0 0.0
    %1253 = vmatprep.subr.mxu0 0.0
    %1254 = vmatpush1.msra.mxu0 0.0
    %1255 = vmatprep.subr.mxu0 0.0
    %1256 = vmatpush1.msra.mxu0 0.0
    %1257 = vmatprep.subr.mxu0 0.0
    %1258 = vmatpush1.msra.mxu0 0.0
    %1259 = vmatprep.subr.mxu0 0.0
    %1260 = vmatpush1.msra.mxu0 0.0
    %1261 = vmatprep.subr.mxu0 0.0
    %1262 = vmatpush1.msra.mxu0 0.0
    %1263 = vmatprep.subr.mxu0 0.0
    %1264 = vmatpush1.msra.mxu0 0.0
    %1265 = vmatprep.subr.mxu0 0.0
    %1266 = vmatpush1.msra.mxu0 0.0
    %1267 = vmatprep.subr.mxu0 0.0
    %1268 = vmatpush1.msra.mxu0 0.0
    %1269 = vmatprep.subr.mxu0 0.0
    %1270 = vmatpush1.msra.mxu0 0.0
    %1271 = vmatprep.subr.mxu0 0.0
    %1272 = vmatpush1.msra.mxu0 0.0
    %1273 = vmatprep.subr.mxu0 0.0
    %1274 = vmatpush1.msra.mxu0 0.0
    %1275 = vmatprep.subr.mxu0 0.0
    %1276 = vmatpush1.msra.mxu0 0.0
    %1277 = vmatprep.subr.mxu0 0.0
    %1278 = vmatpush1.msra.mxu0 0.0
    %1279 = vmatprep.subr.mxu0 0.0
    %1280 = vmatpush1.msra.mxu0 0.0
    %1281 = vmatprep.subr.mxu0 0.0
    %1282 = vmatpush1.msra.mxu0 0.0
    %1283 = vmatprep.subr.mxu0 0.0
    %1284 = vmatpush1.msra.mxu0 0.0
    %1285 = vmatprep.subr.mxu0 0.0
    %1286 = vmatpush1.msra.mxu0 0.0
    %1287 = vmatprep.subr.mxu0 0.0
    %1288 = vmatpush1.msra.mxu0 0.0
    %1289 = vmatprep.subr.mxu0 0.0
    %1290 = vmatpush1.msra.mxu0 0.0
    %1291 = vmatprep.mubr.f32.mxu0 0.0
    %1292 = vmatmul.mubr.f32.gmra.mrb[0].mxu0 %v1225
    %v1293 = vpop.f32.mrb[0].mxu0
    %v1294 = vadd.f32 0.0, %v1293
    %v1295 = vpop.f32.mrb[0].mxu0
    %1296 = vdwg.mxu0
    %v1297 = vadd.f32 %v179, %v1294
    %v1298 = vxor.u32 %v1297, 2147483648
    %v1299 = vmul.f32 %v1298, 1.442695
    %v1300 = vpow.pop %v1299
    %v1301 = vadd.f32 %v1300, 1.0
    %v1302 = vrcp.pop %v1301
    %v1303 = vmul.f32 1.0, %v1302
    %v1304 = vtanh.pop %v1297
    %v1305 = vmul.f32 %v1303, %v1112
    %1307 = vrot.lane.b32.xlu0 %v1304, 64
    %v1308 = vpop.permute.xlu0 %1307
    %v1310 = vmul.f32 %v1303, %v1308
    %1312 = vrot.lane.b32.xlu0 %v1310, 32
    %v1313 = vpop.permute.xlu0 %1312
    %v1315 = vadd.f32 %v1305, %v1313
    %v1316 = vtanh.pop %v1315
    %1318 = vrot.lane.b32.xlu0 %v1316, 64
    %v1319 = vpop.permute.xlu0 %1318
    %v1321 = vmul.f32 %v1303, %v1319
    %1323 = vrot.lane.b32.xlu0 %v1321, 32
    %v1324 = vpop.permute.xlu0 %1323
    %1327 = vrot.lane.b32.xlu0 %v1224, 64
    %v1328 = vpop.permute.xlu0 %1327
    %v1330 = vsel %vm205, %v1324, %v1328
    %v1332 = vsel %vm315, %v1330, 0
    %1334 = vmatprep.subr.mxu0 0.0
    %1335 = vmatpush1.msra.mxu0 %v196
    %1336 = vmatprep.subr.mxu0 0.0
    %1337 = vmatpush1.msra.mxu0 %v197
    %1338 = vmatprep.subr.mxu0 0.0
    %1339 = vmatpush1.msra.mxu0 %v198
    %1340 = vmatprep.subr.mxu0 0.0
    %1341 = vmatpush1.msra.mxu0 %v199
    %1342 = vmatprep.subr.mxu0 0.0
    %1343 = vmatpush1.msra.mxu0 %v200
    %1344 = vmatprep.subr.mxu0 0.0
    %1345 = vmatpush1.msra.mxu0 %v201
    %1346 = vmatprep.subr.mxu0 0.0
    %1347 = vmatpush1.msra.mxu0 %v202
    %1348 = vmatprep.subr.mxu0 0.0
    %1349 = vmatpush1.msra.mxu0 %v203
    %1350 = vmatprep.subr.mxu0 0.0
    %1351 = vmatpush1.msra.mxu0 0.0
    %1352 = vmatprep.subr.mxu0 0.0
    %1353 = vmatpush1.msra.mxu0 0.0
    %1354 = vmatprep.subr.mxu0 0.0
    %1355 = vmatpush1.msra.mxu0 0.0
    %1356 = vmatprep.subr.mxu0 0.0
    %1357 = vmatpush1.msra.mxu0 0.0
    %1358 = vmatprep.subr.mxu0 0.0
    %1359 = vmatpush1.msra.mxu0 0.0
    %1360 = vmatprep.subr.mxu0 0.0
    %1361 = vmatpush1.msra.mxu0 0.0
    %1362 = vmatprep.subr.mxu0 0.0
    %1363 = vmatpush1.msra.mxu0 0.0
    %1364 = vmatprep.subr.mxu0 0.0
    %1365 = vmatpush1.msra.mxu0 0.0
    %1366 = vmatprep.subr.mxu0 0.0
    %1367 = vmatpush1.msra.mxu0 0.0
    %1368 = vmatprep.subr.mxu0 0.0
    %1369 = vmatpush1.msra.mxu0 0.0
    %1370 = vmatprep.subr.mxu0 0.0
    %1371 = vmatpush1.msra.mxu0 0.0
    %1372 = vmatprep.subr.mxu0 0.0
    %1373 = vmatpush1.msra.mxu0 0.0
    %1374 = vmatprep.subr.mxu0 0.0
    %1375 = vmatpush1.msra.mxu0 0.0
    %1376 = vmatprep.subr.mxu0 0.0
    %1377 = vmatpush1.msra.mxu0 0.0
    %1378 = vmatprep.subr.mxu0 0.0
    %1379 = vmatpush1.msra.mxu0 0.0
    %1380 = vmatprep.subr.mxu0 0.0
    %1381 = vmatpush1.msra.mxu0 0.0
    %1382 = vmatprep.subr.mxu0 0.0
    %1383 = vmatpush1.msra.mxu0 0.0
    %1384 = vmatprep.subr.mxu0 0.0
    %1385 = vmatpush1.msra.mxu0 0.0
    %1386 = vmatprep.subr.mxu0 0.0
    %1387 = vmatpush1.msra.mxu0 0.0
    %1388 = vmatprep.subr.mxu0 0.0
    %1389 = vmatpush1.msra.mxu0 0.0
    %1390 = vmatprep.subr.mxu0 0.0
    %1391 = vmatpush1.msra.mxu0 0.0
    %1392 = vmatprep.subr.mxu0 0.0
    %1393 = vmatpush1.msra.mxu0 0.0
    %1394 = vmatprep.subr.mxu0 0.0
    %1395 = vmatpush1.msra.mxu0 0.0
    %1396 = vmatprep.subr.mxu0 0.0
    %1397 = vmatpush1.msra.mxu0 0.0
    %1398 = vmatprep.mubr.f32.mxu0 0.0
    %1399 = vmatmul.mubr.f32.gmra.mrb[0].mxu0 %v1332
    %v1400 = vpop.f32.mrb[0].mxu0
    %v1401 = vadd.f32 %v313, %v1400
    %v1402 = vpop.f32.mrb[0].mxu0
    %1403 = vdwg.mxu0
    %v1404 = vxor.u32 %v1401, 2147483648
    %v1405 = vmul.f32 %v1404, 1.442695
    %v1406 = vpow.pop %v1405
    %v1407 = vadd.f32 %v1406, 1.0
    %v1408 = vrcp.pop %v1407
    %v1409 = vmul.f32 1.0, %v1408
    %v1410 = vtanh.pop %v1401
    %v1411 = vmul.f32 %v1409, %v1218
    %1413 = vrot.lane.b32.xlu0 %v1410, 64
    %v1414 = vpop.permute.xlu0 %1413
    %v1416 = vmul.f32 %v1409, %v1414
    %1418 = vrot.lane.b32.xlu0 %v1416, 32
    %v1419 = vpop.permute.xlu0 %1418
    %v1421 = vadd.f32 %v1411, %v1419
    %v1422 = vtanh.pop %v1421
    %1424 = vrot.lane.b32.xlu0 %v1422, 64
    %v1425 = vpop.permute.xlu0 %1424
    %v1427 = vmul.f32 %v1409, %v1425
    %v1428 = vsel %vm205, %v1324, 0
    %1430 = vmatprep.subr.mxu0 0.0
    %1431 = vmatpush1.msra.mxu0 %v192
    %1432 = vmatprep.subr.mxu0 0.0
    %1433 = vmatpush1.msra.mxu0 %v193
    %1434 = vmatprep.subr.mxu0 0.0
    %1435 = vmatpush1.msra.mxu0 %v194
    %1436 = vmatprep.subr.mxu0 0.0
    %1437 = vmatpush1.msra.mxu0 %v195
    %1438 = vmatprep.subr.mxu0 0.0
    %1439 = vmatpush1.msra.mxu0 0.0
    %1440 = vmatprep.subr.mxu0 0.0
    %1441 = vmatpush1.msra.mxu0 0.0
    %1442 = vmatprep.subr.mxu0 0.0
    %1443 = vmatpush1.msra.mxu0 0.0
    %1444 = vmatprep.subr.mxu0 0.0
    %1445 = vmatpush1.msra.mxu0 0.0
    %1446 = vmatprep.subr.mxu0 0.0
    %1447 = vmatpush1.msra.mxu0 0.0
    %1448 = vmatprep.subr.mxu0 0.0
    %1449 = vmatpush1.msra.mxu0 0.0
    %1450 = vmatprep.subr.mxu0 0.0
    %1451 = vmatpush1.msra.mxu0 0.0
    %1452 = vmatprep.subr.mxu0 0.0
    %1453 = vmatpush1.msra.mxu0 0.0
    %1454 = vmatprep.subr.mxu0 0.0
    %1455 = vmatpush1.msra.mxu0 0.0
    %1456 = vmatprep.subr.mxu0 0.0
    %1457 = vmatpush1.msra.mxu0 0.0
    %1458 = vmatprep.subr.mxu0 0.0
    %1459 = vmatpush1.msra.mxu0 0.0
    %1460 = vmatprep.subr.mxu0 0.0
    %1461 = vmatpush1.msra.mxu0 0.0
    %1462 = vmatprep.subr.mxu0 0.0
    %1463 = vmatpush1.msra.mxu0 0.0
    %1464 = vmatprep.subr.mxu0 0.0
    %1465 = vmatpush1.msra.mxu0 0.0
    %1466 = vmatprep.subr.mxu0 0.0
    %1467 = vmatpush1.msra.mxu0 0.0
    %1468 = vmatprep.subr.mxu0 0.0
    %1469 = vmatpush1.msra.mxu0 0.0
    %1470 = vmatprep.subr.mxu0 0.0
    %1471 = vmatpush1.msra.mxu0 0.0
    %1472 = vmatprep.subr.mxu0 0.0
    %1473 = vmatpush1.msra.mxu0 0.0
    %1474 = vmatprep.subr.mxu0 0.0
    %1475 = vmatpush1.msra.mxu0 0.0
    %1476 = vmatprep.subr.mxu0 0.0
    %1477 = vmatpush1.msra.mxu0 0.0
    %1478 = vmatprep.subr.mxu0 0.0
    %1479 = vmatpush1.msra.mxu0 0.0
    %1480 = vmatprep.subr.mxu0 0.0
    %1481 = vmatpush1.msra.mxu0 0.0
    %1482 = vmatprep.subr.mxu0 0.0
    %1483 = vmatpush1.msra.mxu0 0.0
    %1484 = vmatprep.subr.mxu0 0.0
    %1485 = vmatpush1.msra.mxu0 0.0
    %1486 = vmatprep.subr.mxu0 0.0
    %1487 = vmatpush1.msra.mxu0 0.0
    %1488 = vmatprep.subr.mxu0 0.0
    %1489 = vmatpush1.msra.mxu0 0.0
    %1490 = vmatprep.subr.mxu0 0.0
    %1491 = vmatpush1.msra.mxu0 0.0
    %1492 = vmatprep.subr.mxu0 0.0
    %1493 = vmatpush1.msra.mxu0 0.0
    %1494 = vmatprep.mubr.f32.mxu0 0.0
    %1495 = vmatmul.mubr.f32.gmra.mrb[0].mxu0 %v1428
    %v1496 = vpop.f32.mrb[0].mxu0
    %v1497 = vadd.f32 0.0, %v1496
    %v1498 = vpop.f32.mrb[0].mxu0
    %1499 = vdwg.mxu0
    %v1500 = vadd.f32 %v184, %v1497
    %v1501 = vxor.u32 %v1500, 2147483648
    %v1502 = vmul.f32 %v1501, 1.442695
    %v1503 = vpow.pop %v1502
    %v1504 = vadd.f32 %v1503, 1.0
    %v1505 = vrcp.pop %v1504
    %v1506 = vmul.f32 1.0, %v1505
    %v1507 = vtanh.pop %v1500
    %v1508 = vmul.f32 %v1506, %v1315
    %1510 = vrot.lane.b32.xlu0 %v1507, 64
    %v1511 = vpop.permute.xlu0 %1510
    %v1513 = vmul.f32 %v1506, %v1511
    %1515 = vrot.lane.b32.xlu0 %v1513, 32
    %v1516 = vpop.permute.xlu0 %1515
    %v1518 = vadd.f32 %v1508, %v1516
    %v1519 = vtanh.pop %v1518
    %1521 = vrot.lane.b32.xlu0 %v1519, 64
    %v1522 = vpop.permute.xlu0 %1521
    %v1524 = vmul.f32 %v1506, %v1522
    %1526 = vrot.lane.b32.xlu0 %v1524, 32
    %v1527 = vpop.permute.xlu0 %1526
    %1530 = vrot.lane.b32.xlu0 %v1427, 64
    %v1531 = vpop.permute.xlu0 %1530
    %v1533 = vsel %vm205, %v1527, %v1531
    %v1535 = vsel %vm315, %v1533, 0
    %1537 = vmatprep.subr.mxu0 0.0
    %1538 = vmatpush1.msra.mxu0 %v196
    %1539 = vmatprep.subr.mxu0 0.0
    %1540 = vmatpush1.msra.mxu0 %v197
    %1541 = vmatprep.subr.mxu0 0.0
    %1542 = vmatpush1.msra.mxu0 %v198
    %1543 = vmatprep.subr.mxu0 0.0
    %1544 = vmatpush1.msra.mxu0 %v199
    %1545 = vmatprep.subr.mxu0 0.0
    %1546 = vmatpush1.msra.mxu0 %v200
    %1547 = vmatprep.subr.mxu0 0.0
    %1548 = vmatpush1.msra.mxu0 %v201
    %1549 = vmatprep.subr.mxu0 0.0
    %1550 = vmatpush1.msra.mxu0 %v202
    %1551 = vmatprep.subr.mxu0 0.0
    %1552 = vmatpush1.msra.mxu0 %v203
    %1553 = vmatprep.subr.mxu0 0.0
    %1554 = vmatpush1.msra.mxu0 0.0
    %1555 = vmatprep.subr.mxu0 0.0
    %1556 = vmatpush1.msra.mxu0 0.0
    %1557 = vmatprep.subr.mxu0 0.0
    %1558 = vmatpush1.msra.mxu0 0.0
    %1559 = vmatprep.subr.mxu0 0.0
    %1560 = vmatpush1.msra.mxu0 0.0
    %1561 = vmatprep.subr.mxu0 0.0
    %1562 = vmatpush1.msra.mxu0 0.0
    %1563 = vmatprep.subr.mxu0 0.0
    %1564 = vmatpush1.msra.mxu0 0.0
    %1565 = vmatprep.subr.mxu0 0.0
    %1566 = vmatpush1.msra.mxu0 0.0
    %1567 = vmatprep.subr.mxu0 0.0
    %1568 = vmatpush1.msra.mxu0 0.0
    %1569 = vmatprep.subr.mxu0 0.0
    %1570 = vmatpush1.msra.mxu0 0.0
    %1571 = vmatprep.subr.mxu0 0.0
    %1572 = vmatpush1.msra.mxu0 0.0
    %1573 = vmatprep.subr.mxu0 0.0
    %1574 = vmatpush1.msra.mxu0 0.0
    %1575 = vmatprep.subr.mxu0 0.0
    %1576 = vmatpush1.msra.mxu0 0.0
    %1577 = vmatprep.subr.mxu0 0.0
    %1578 = vmatpush1.msra.mxu0 0.0
    %1579 = vmatprep.subr.mxu0 0.0
    %1580 = vmatpush1.msra.mxu0 0.0
    %1581 = vmatprep.subr.mxu0 0.0
    %1582 = vmatpush1.msra.mxu0 0.0
    %1583 = vmatprep.subr.mxu0 0.0
    %1584 = vmatpush1.msra.mxu0 0.0
    %1585 = vmatprep.subr.mxu0 0.0
    %1586 = vmatpush1.msra.mxu0 0.0
    %1587 = vmatprep.subr.mxu0 0.0
    %1588 = vmatpush1.msra.mxu0 0.0
    %1589 = vmatprep.subr.mxu0 0.0
    %1590 = vmatpush1.msra.mxu0 0.0
    %1591 = vmatprep.subr.mxu0 0.0
    %1592 = vmatpush1.msra.mxu0 0.0
    %1593 = vmatprep.subr.mxu0 0.0
    %1594 = vmatpush1.msra.mxu0 0.0
    %1595 = vmatprep.subr.mxu0 0.0
    %1596 = vmatpush1.msra.mxu0 0.0
    %1597 = vmatprep.subr.mxu0 0.0
    %1598 = vmatpush1.msra.mxu0 0.0
    %1599 = vmatprep.subr.mxu0 0.0
    %1600 = vmatpush1.msra.mxu0 0.0
    %1601 = vmatprep.mubr.f32.mxu0 0.0
    %1602 = vmatmul.mubr.f32.gmra.mrb[0].mxu0 %v1535
    %v1603 = vpop.f32.mrb[0].mxu0
    %v1604 = vadd.f32 %v313, %v1603
    %v1605 = vpop.f32.mrb[0].mxu0
    %1606 = vdwg.mxu0
    %v1607 = vxor.u32 %v1604, 2147483648
    %v1608 = vmul.f32 %v1607, 1.442695
    %v1609 = vpow.pop %v1608
    %v1610 = vadd.f32 %v1609, 1.0
    %v1611 = vrcp.pop %v1610
    %v1612 = vmul.f32 1.0, %v1611
    %v1613 = vtanh.pop %v1604
    %v1614 = vmul.f32 %v1612, %v1421
    %1616 = vrot.lane.b32.xlu0 %v1613, 64
    %v1617 = vpop.permute.xlu0 %1616
    %v1619 = vmul.f32 %v1612, %v1617
    %1621 = vrot.lane.b32.xlu0 %v1619, 32
    %v1622 = vpop.permute.xlu0 %1621
    %v1624 = vadd.f32 %v1614, %v1622
    %v1625 = vtanh.pop %v1624
    %1627 = vrot.lane.b32.xlu0 %v1625, 64
    %v1628 = vpop.permute.xlu0 %1627
    %v1630 = vmul.f32 %v1612, %v1628
    %v1631 = vsel %vm205, %v1527, 0
    %1633 = vmatprep.subr.mxu0 0.0
    %1634 = vmatpush1.msra.mxu0 %v192
    %1635 = vmatprep.subr.mxu0 0.0
    %1636 = vmatpush1.msra.mxu0 %v193
    %1637 = vmatprep.subr.mxu0 0.0
    %1638 = vmatpush1.msra.mxu0 %v194
    %1639 = vmatprep.subr.mxu0 0.0
    %1640 = vmatpush1.msra.mxu0 %v195
    %1641 = vmatprep.subr.mxu0 0.0
    %1642 = vmatpush1.msra.mxu0 0.0
    %1643 = vmatprep.subr.mxu0 0.0
    %1644 = vmatpush1.msra.mxu0 0.0
    %1645 = vmatprep.subr.mxu0 0.0
    %1646 = vmatpush1.msra.mxu0 0.0
    %1647 = vmatprep.subr.mxu0 0.0
    %1648 = vmatpush1.msra.mxu0 0.0
    %1649 = vmatprep.subr.mxu0 0.0
    %1650 = vmatpush1.msra.mxu0 0.0
    %1651 = vmatprep.subr.mxu0 0.0
    %1652 = vmatpush1.msra.mxu0 0.0
    %1653 = vmatprep.subr.mxu0 0.0
    %1654 = vmatpush1.msra.mxu0 0.0
    %1655 = vmatprep.subr.mxu0 0.0
    %1656 = vmatpush1.msra.mxu0 0.0
    %1657 = vmatprep.subr.mxu0 0.0
    %1658 = vmatpush1.msra.mxu0 0.0
    %1659 = vmatprep.subr.mxu0 0.0
    %1660 = vmatpush1.msra.mxu0 0.0
    %1661 = vmatprep.subr.mxu0 0.0
    %1662 = vmatpush1.msra.mxu0 0.0
    %1663 = vmatprep.subr.mxu0 0.0
    %1664 = vmatpush1.msra.mxu0 0.0
    %1665 = vmatprep.subr.mxu0 0.0
    %1666 = vmatpush1.msra.mxu0 0.0
    %1667 = vmatprep.subr.mxu0 0.0
    %1668 = vmatpush1.msra.mxu0 0.0
    %1669 = vmatprep.subr.mxu0 0.0
    %1670 = vmatpush1.msra.mxu0 0.0
    %1671 = vmatprep.subr.mxu0 0.0
    %1672 = vmatpush1.msra.mxu0 0.0
    %1673 = vmatprep.subr.mxu0 0.0
    %1674 = vmatpush1.msra.mxu0 0.0
    %1675 = vmatprep.subr.mxu0 0.0
    %1676 = vmatpush1.msra.mxu0 0.0
    %1677 = vmatprep.subr.mxu0 0.0
    %1678 = vmatpush1.msra.mxu0 0.0
    %1679 = vmatprep.subr.mxu0 0.0
    %1680 = vmatpush1.msra.mxu0 0.0
    %1681 = vmatprep.subr.mxu0 0.0
    %1682 = vmatpush1.msra.mxu0 0.0
    %1683 = vmatprep.subr.mxu0 0.0
    %1684 = vmatpush1.msra.mxu0 0.0
    %1685 = vmatprep.subr.mxu0 0.0
    %1686 = vmatpush1.msra.mxu0 0.0
    %1687 = vmatprep.subr.mxu0 0.0
    %1688 = vmatpush1.msra.mxu0 0.0
    %1689 = vmatprep.subr.mxu0 0.0
    %1690 = vmatpush1.msra.mxu0 0.0
    %1691 = vmatprep.subr.mxu0 0.0
    %1692 = vmatpush1.msra.mxu0 0.0
    %1693 = vmatprep.subr.mxu0 0.0
    %1694 = vmatpush1.msra.mxu0 0.0
    %1695 = vmatprep.subr.mxu0 0.0
    %1696 = vmatpush1.msra.mxu0 0.0
    %1697 = vmatprep.mubr.f32.mxu0 0.0
    %1698 = vmatmul.mubr.f32.gmra.mrb[0].mxu0 %v1631
    %v1699 = vpop.f32.mrb[0].mxu0
    %v1700 = vadd.f32 0.0, %v1699
    %v1701 = vpop.f32.mrb[0].mxu0
    %1702 = vdwg.mxu0
    %v1703 = vadd.f32 %v189, %v1700
    %v1704 = vxor.u32 %v1703, 2147483648
    %v1705 = vmul.f32 %v1704, 1.442695
    %v1706 = vpow.pop %v1705
    %v1707 = vadd.f32 %v1706, 1.0
    %v1708 = vrcp.pop %v1707
    %v1709 = vmul.f32 1.0, %v1708
    %v1710 = vtanh.pop %v1703
    %v1711 = vmul.f32 %v1709, %v1518
    %1713 = vrot.lane.b32.xlu0 %v1710, 64
    %v1714 = vpop.permute.xlu0 %1713
    %v1716 = vmul.f32 %v1709, %v1714
    %1718 = vrot.lane.b32.xlu0 %v1716, 32
    %v1719 = vpop.permute.xlu0 %1718
    %v1721 = vadd.f32 %v1711, %v1719
    %v1722 = vtanh.pop %v1721
    %1724 = vrot.lane.b32.xlu0 %v1722, 64
    %v1725 = vpop.permute.xlu0 %1724
    %v1727 = vmul.f32 %v1709, %v1725
    %1729 = vrot.lane.b32.xlu0 %v1727, 32
    %v1730 = vpop.permute.xlu0 %1729
    %1733 = vrot.lane.b32.xlu0 %v1630, 64
    %v1734 = vpop.permute.xlu0 %1733
    %v1736 = vsel %vm205, %v1730, %v1734
    %v1738 = vsel %vm315, %v1736, 0
    %1740 = vmatprep.subr.mxu0 0.0
    %1741 = vmatpush1.msra.mxu0 %v196
    %1742 = vmatprep.subr.mxu0 0.0
    %1743 = vmatpush1.msra.mxu0 %v197
    %1744 = vmatprep.subr.mxu0 0.0
    %1745 = vmatpush1.msra.mxu0 %v198
    %1746 = vmatprep.subr.mxu0 0.0
    %1747 = vmatpush1.msra.mxu0 %v199
    %1748 = vmatprep.subr.mxu0 0.0
    %1749 = vmatpush1.msra.mxu0 %v200
    %1750 = vmatprep.subr.mxu0 0.0
    %1751 = vmatpush1.msra.mxu0 %v201
    %1752 = vmatprep.subr.mxu0 0.0
    %1753 = vmatpush1.msra.mxu0 %v202
    %1754 = vmatprep.subr.mxu0 0.0
    %1755 = vmatpush1.msra.mxu0 %v203
    %1756 = vmatprep.subr.mxu0 0.0
    %1757 = vmatpush1.msra.mxu0 0.0
    %1758 = vmatprep.subr.mxu0 0.0
    %1759 = vmatpush1.msra.mxu0 0.0
    %1760 = vmatprep.subr.mxu0 0.0
    %1761 = vmatpush1.msra.mxu0 0.0
    %1762 = vmatprep.subr.mxu0 0.0
    %1763 = vmatpush1.msra.mxu0 0.0
    %1764 = vmatprep.subr.mxu0 0.0
    %1765 = vmatpush1.msra.mxu0 0.0
    %1766 = vmatprep.subr.mxu0 0.0
    %1767 = vmatpush1.msra.mxu0 0.0
    %1768 = vmatprep.subr.mxu0 0.0
    %1769 = vmatpush1.msra.mxu0 0.0
    %1770 = vmatprep.subr.mxu0 0.0
    %1771 = vmatpush1.msra.mxu0 0.0
    %1772 = vmatprep.subr.mxu0 0.0
    %1773 = vmatpush1.msra.mxu0 0.0
    %1774 = vmatprep.subr.mxu0 0.0
    %1775 = vmatpush1.msra.mxu0 0.0
    %1776 = vmatprep.subr.mxu0 0.0
    %1777 = vmatpush1.msra.mxu0 0.0
    %1778 = vmatprep.subr.mxu0 0.0
    %1779 = vmatpush1.msra.mxu0 0.0
    %1780 = vmatprep.subr.mxu0 0.0
    %1781 = vmatpush1.msra.mxu0 0.0
    %1782 = vmatprep.subr.mxu0 0.0
    %1783 = vmatpush1.msra.mxu0 0.0
    %1784 = vmatprep.subr.mxu0 0.0
    %1785 = vmatpush1.msra.mxu0 0.0
    %1786 = vmatprep.subr.mxu0 0.0
    %1787 = vmatpush1.msra.mxu0 0.0
    %1788 = vmatprep.subr.mxu0 0.0
    %1789 = vmatpush1.msra.mxu0 0.0
    %1790 = vmatprep.subr.mxu0 0.0
    %1791 = vmatpush1.msra.mxu0 0.0
    %1792 = vmatprep.subr.mxu0 0.0
    %1793 = vmatpush1.msra.mxu0 0.0
    %1794 = vmatprep.subr.mxu0 0.0
    %1795 = vmatpush1.msra.mxu0 0.0
    %1796 = vmatprep.subr.mxu0 0.0
    %1797 = vmatpush1.msra.mxu0 0.0
    %1798 = vmatprep.subr.mxu0 0.0
    %1799 = vmatpush1.msra.mxu0 0.0
    %1800 = vmatprep.subr.mxu0 0.0
    %1801 = vmatpush1.msra.mxu0 0.0
    %1802 = vmatprep.subr.mxu0 0.0
    %1803 = vmatpush1.msra.mxu0 0.0
    %1804 = vmatprep.mubr.f32.mxu0 0.0
    %1805 = vmatmul.mubr.f32.gmra.mrb[0].mxu0 %v1738
    %v1806 = vpop.f32.mrb[0].mxu0
    %v1807 = vadd.f32 %v313, %v1806
    %v1808 = vpop.f32.mrb[0].mxu0
    %1809 = vdwg.mxu0
    %v1810 = vxor.u32 %v1807, 2147483648
    %v1811 = vmul.f32 %v1810, 1.442695
    %v1812 = vpow.pop %v1811
    %v1813 = vadd.f32 %v1812, 1.0
    %v1814 = vrcp.pop %v1813
    %v1815 = vmul.f32 1.0, %v1814
    %v1816 = vtanh.pop %v1807
    %v1817 = vmul.f32 %v1815, %v1624
    %1819 = vrot.lane.b32.xlu0 %v1816, 64
    %v1820 = vpop.permute.xlu0 %1819
    %v1822 = vmul.f32 %v1815, %v1820
    %1824 = vrot.lane.b32.xlu0 %v1822, 32
    %v1825 = vpop.permute.xlu0 %1824
    %v1827 = vadd.f32 %v1817, %v1825
    %v1828 = vtanh.pop %v1827
    %1830 = vrot.lane.b32.xlu0 %v1828, 64
    %v1831 = vpop.permute.xlu0 %1830
    %v1833 = vmul.f32 %v1815, %v1831
    %v1834 = vld [vmem:[%s6] sm:$0x1]
    %v1836 = vlaneseq
    %v1837 = vshrl.u32 %v1836, 7
    %v1838 = vsub.s32 0, %v1837
    %v1839 = vrot.slane %v1834, %v1838
    %1840 = vrot.lane.b32.xlu0 %v1839, 96
    %v1841 = vpop.permute.xlu0 %1840
    %v1843 = vmul.f32 %v1833, %v1841
    %1845 = vrot.lane.b32.xlu0 %v1843, 32
    %v1846 = vpop.permute.xlu0 %1845
    %v1848 = vsel %vm205, %v1846, 0.0
    %1849 = vadd.xlane.f32.xlu0 %v1848
    %v1850 = vpop.xlane.xlu0 %1849
    %v1851 = vld [vmem:[#allocation2] sm:$0x1]
    %v1853 = vlaneseq
    %v1854 = vshrl.u32 %v1853, 7
    %v1855 = vsub.s32 0, %v1854
    %v1856 = vrot.slane %v1851, %v1855
    %v1858 = vadd.f32 %v1850, %v1856
    %vm1859 = vcmask 7168
    %1860 = vst.msk [vmem:[%s8] sm:$0xff] %vm1859, %v1858
    // Predicated region
    $region38: #{tpu_custom_call.1} parent=1 // pred_check
      _
    $region39: #{tpu_custom_call.1} parent=1 // pred_check_branch
      %1862 = sbr.rel (0) target = $region41
    $region40: #{tpu_custom_call.1} parent=1 // pred_region
      _
    $region41: #{tpu_custom_call.1} parent=1 // pred_fallthru
      _
    // Predicated region
    $region42: #{tpu_custom_call.1} parent=1 // pred_check
      _
    $region43: #{tpu_custom_call.1} parent=1 // pred_check_branch
      %1864 = sbr.rel (0) target = $region45
    $region44: #{tpu_custom_call.1} parent=1 // pred_region
      _
    $region45: #{tpu_custom_call.1} parent=1 // pred_fallthru
      _
    %1865 = vsyncpa [#allocation4], 1

</llo_original>
